<compile_context>
chip_gen: v7x
topology: tpu7x:2x2x1
jax: 0.10.0
libtpu: 0.0.40
codegen_flags: <defaults>
</compile_context>

<pallas_src>
import functools

import jax
import jax.numpy as jnp
from jax.experimental import pallas as pl
from jax.experimental.pallas import tpu as pltpu

K = 7   # conv kernel size
P = 3   # padding


def _tree_sum(parts):
    """Shallow pairwise tree-sum (ILP on the VPU, no deep accumulator chain)."""
    while len(parts) > 1:
        nxt = [parts[i] + parts[i + 1] for i in range(0, len(parts) - 1, 2)]
        if len(parts) & 1:
            nxt.append(parts[-1])
        parts = nxt
    return parts[0]


def _channel_mean_max(xb_ref, C):
    """Fused single-pass channel mean + max of one (C, HW) image view.

    Returns ((1, HW) f32 mean, (1, HW) f32 max)."""
    CB = 8  # one sublane group per block
    if C <= 2 * CB:
        xb = xb_ref[...]
        s = jnp.sum(xb.astype(jnp.float32), axis=0, keepdims=True)
        m = jnp.max(xb, axis=0, keepdims=True)
    else:
        nfull = C // CB
        blk0 = xb_ref[pl.ds(0, CB), :]
        s0 = jnp.sum(blk0.astype(jnp.float32), axis=0, keepdims=True)
        m0 = jnp.max(blk0, axis=0, keepdims=True)

        def body(i, carry):
            s, m = carry
            blk = xb_ref[pl.ds(i * CB, CB), :]
            s = s + jnp.sum(blk.astype(jnp.float32), axis=0, keepdims=True)
            m = jnp.maximum(m, jnp.max(blk, axis=0, keepdims=True))
            return s, m

        s, m = jax.lax.fori_loop(1, nfull, body, (s0, m0), unroll=2)
        rem = C - nfull * CB
        if rem:
            tail = xb_ref[pl.ds(nfull * CB, rem), :]
            s = s + jnp.sum(tail.astype(jnp.float32), axis=0, keepdims=True)
            m = jnp.maximum(m, jnp.max(tail, axis=0, keepdims=True))
    return s * (1.0 / C), m.astype(jnp.float32)


def _sa_kernel(w_ref, x_ref, o_ref, mean_ref, max_ref, attn_ref, *, H, W):
    # w_ref   : SMEM (2*K*K,) f32   conv weight, flattened (in_ch, kh, kw)
    # x_ref   : VMEM (nb, C, HW)    lane-dense input block (nb images)
    # o_ref   : VMEM (nb, C, HW)
    # mean_ref: VMEM (nb, BUF) f32  row-padded flat mean planes (+ lane slack)
    # max_ref : VMEM (nb, BUF) f32  row-padded flat max  planes (+ lane slack)
    # attn_ref: VMEM (nb, HW)  x-dtype   sigmoid(conv) gate, one row per image
    nb, C, HW = x_ref.shape
    LEN = (H + 2 * P) * W            # row-padded flat plane length
    DATA_OFF = P + P * W             # where the H*W data lives in the buffer

    # --- phase 0: zero the padded scratch unconditionally every grid step ---
    # (megacore-safe; borders / lane slack must be 0, data region overwritten)
    mean_ref[...] = jnp.zeros_like(mean_ref)
    max_ref[...] = jnp.zeros_like(max_ref)

    # --- phase 1: per-image fused channel mean/max -> packed padded planes --
    for b in range(nb):                                    # nb <= 8, tiny state
        s, m = _channel_mean_max(x_ref.at[b], C)           # (1, HW) f32 each
        mean_ref[b:b + 1, DATA_OFF:DATA_OFF + HW] = s
        max_ref[b:b + 1, DATA_OFF:DATA_OFF + HW] = m

    # --- phase 2: 7x7 conv, batched over all nb images (sublane packed) -----
    # Column-validity masks, one per kj (hoisted out of all loops).
    lane = jax.lax.broadcasted_iota(jnp.int32, (1, LEN), 1)
    col = lane % W
    col_ok = [(col + (kj - P) >= 0) & (col + (kj - P) < W) for kj in range(K)]

    # Conv weights: 2*49 scalar SMEM reads, hoisted (read once per grid step).
    wv = [w_ref[i] for i in range(2 * K * K)]

    chan = []
    for c, buf in ((0, mean_ref), (1, max_ref)):           # cat([mean, max])
        # 7 column-shifted copies of all nb planes (one lane-offset load each).
        cs = [jnp.where(col_ok[kj], buf[:, kj:kj + LEN], 0.0)
              for kj in range(K)]
        parts = []
        for ki in range(K):
            base = c * K * K + ki * K
            rp = cs[0] * wv[base]
            for kj in range(1, K):
                rp = rp + cs[kj] * wv[base + kj]            # 49 MACs / channel
            parts.append(rp[:, ki * W:ki * W + HW])         # row shift (nb,HW)
        chan.append(_tree_sum(parts))                       # 7-way tree sum
    feats = chan[0] + chan[1]                               # (nb, HW) f32

    attn_ref[...] = jax.nn.sigmoid(feats).astype(attn_ref.dtype)

    # --- phase 3: gating, lane-dense (C, HW) multiply + store per image -----
    for b in range(nb):
        a = attn_ref[b:b + 1, :]                            # (1, HW)
        o_ref[b] = (x_ref[b] * a).astype(o_ref.dtype)


def _pick_batch_block(N, C, HW, itemsize,
                      budget_bytes=24 * 1024 * 1024, max_rows=8):
    """Images per grid step.

    Constraints: (a) in+out blocks, double-buffered, stay under budget_bytes;
    (b) at most `max_rows` (one sublane group; bounds per-image unrolls);
    (c) at least 2 grid steps whenever N >= 2 (pipelining + v7x megacore);
    (d) nb divides N."""
    per_img = max(4 * C * HW * itemsize, 1)
    nb = min(N, max_rows, max(1, budget_bytes // per_img))
    if N >= 2:
        nb = min(nb, N // 2)
    nb = max(nb, 1)
    while N % nb:
        nb -= 1
    return nb


def spatial_attention(x, weight):
    """x: (N, C, H, W).  weight: (1, 2, K, K) f32 (PyTorch OIHW, no bias)."""
    N, C, H, W = x.shape
    HW = H * W
    w_flat = weight.reshape(-1).astype(jnp.float32)        # (2*K*K,)
    x_flat = x.reshape(N, C, HW)                           # free layout change

    nb = _pick_batch_block(N, C, HW, x.dtype.itemsize)
    BUF = (H + 2 * P) * W + 2 * P                          # padded plane + slack

    block_bytes = nb * C * HW * x.dtype.itemsize
    scratch_bytes = 2 * nb * BUF * 4 + nb * HW * x.dtype.itemsize
    vmem_limit = int(max(4 * block_bytes + scratch_bytes + (4 << 20), 32 << 20))

    kernel = functools.partial(_sa_kernel, H=H, W=W)

    out_flat = pl.pallas_call(
        kernel,
        out_shape=jax.ShapeDtypeStruct((N, C, HW), x.dtype),
        grid_spec=pltpu.PrefetchScalarGridSpec(
            num_scalar_prefetch=0,
            grid=(N // nb,),
            in_specs=[
                pl.BlockSpec(memory_space=pltpu.MemorySpace.SMEM),   # weight
                pl.BlockSpec((nb, C, HW), lambda i: (i, 0, 0)),      # x
            ],
            out_specs=pl.BlockSpec((nb, C, HW), lambda i: (i, 0, 0)),
            scratch_shapes=[
                pltpu.VMEM((nb, BUF), jnp.float32),   # mean planes (padded)
                pltpu.VMEM((nb, BUF), jnp.float32),   # max planes (padded)
                pltpu.VMEM((nb, HW), x.dtype),        # sigmoid gate rows
            ],
        ),
        compiler_params=pltpu.CompilerParams(
            dimension_semantics=("parallel",),
            vmem_limit_bytes=vmem_limit,
        ),
    )(w_flat, x_flat)
    return out_flat.reshape(N, C, H, W)


def spatial_attention_ref(x, weight):
    """Pure-JAX reference (mirrors the PyTorch forward)."""
    x1 = jnp.mean(x, axis=1, keepdims=True)
    x2 = jnp.max(x, axis=1, keepdims=True)
    feats = jnp.concatenate([x1, x2], axis=1)              # (N,2,H,W)
    feats = jax.lax.conv_general_dilated(
        feats, weight, window_strides=(1, 1), padding=[(P, P), (P, P)],
        dimension_numbers=("NCHW", "OIHW", "NCHW"))
    return x * jax.nn.sigmoid(feats)


if __name__ == "__main__":
    key = jax.random.PRNGKey(0)
    kx, kw = jax.random.split(key)

    N, C, H, W = 2, 4, 16, 16
    x = jax.random.normal(kx, (N, C, H, W), dtype=jnp.float32)

    # Deterministic init ~ PyTorch Conv2d default (kaiming_uniform, fan_in=2*7*7).
    fan_in = 2 * K * K
    bound = 1.0 / jnp.sqrt(jnp.float32(fan_in))
    weight = jax.random.uniform(kw, (1, 2, K, K), jnp.float32, -bound, bound)

    out = spatial_attention(x, weight)
    out = jax.block_until_ready(out)

    ref = spatial_attention_ref(x, weight)
    assert out.shape == (N, C, H, W)
    assert jnp.allclose(out, ref, atol=1e-5, rtol=1e-5), "mismatch vs reference"

    print("KERNEL_OK")
</pallas_src>

<mosaic_0001>
module attributes {stable_mosaic.version = 11 : i64} {
  func.func @_sa_kernel(%arg0: i32, %arg1: memref<98xf32, #tpu.memory_space<smem>>, %arg2: memref<1x4x256xf32, #tpu.memory_space<vmem>>, %arg3: memref<1x4x256xf32, #tpu.memory_space<vmem>>, %arg4: memref<1x358xf32, #tpu.memory_space<vmem>>, %arg5: memref<1x358xf32, #tpu.memory_space<vmem>>, %arg6: memref<1x256xf32, #tpu.memory_space<vmem>>) attributes {dimension_semantics = [#tpu.dimension_semantics<parallel>], iteration_bounds = array<i64: 2>, scalar_prefetch = 0 : i64, scratch_operands = 3 : i64, tpu.core_type = #tpu.core_type<tc>, window_params = [{transform_indices = @transform_0, window_bounds = array<i64: 98>}, {transform_indices = @transform_1, window_bounds = array<i64: 1, 4, 256>}, {transform_indices = @transform_2, window_bounds = array<i64: 1, 4, 256>}]} {
    %cst = arith.constant 0.000000e+00 : f32
    %0 = vector.broadcast %cst : f32 to vector<1x358xf32>
    %c0 = arith.constant 0 : index
    %c0_0 = arith.constant 0 : index
    %1 = vector.load %arg4[%c0, %c0_0] : memref<1x358xf32, #tpu.memory_space<vmem>>, vector<1x358xf32>
    tpu.vector_store %arg4[%c0, %c0_0], %0 {strides = array<i32>} : memref<1x358xf32, #tpu.memory_space<vmem>>, vector<1x358xf32>,
    %cst_1 = arith.constant 0.000000e+00 : f32
    %2 = vector.broadcast %cst_1 : f32 to vector<1x358xf32>
    %c0_2 = arith.constant 0 : index
    %c0_3 = arith.constant 0 : index
    %3 = vector.load %arg5[%c0_2, %c0_3] : memref<1x358xf32, #tpu.memory_space<vmem>>, vector<1x358xf32>
    tpu.vector_store %arg5[%c0_2, %c0_3], %2 {strides = array<i32>} : memref<1x358xf32, #tpu.memory_space<vmem>>, vector<1x358xf32>,
    %c0_4 = arith.constant 0 : index
    %c0_5 = arith.constant 0 : index
    %c0_6 = arith.constant 0 : index
    %4 = vector.load %arg2[%c0_4, %c0_5, %c0_6] : memref<1x4x256xf32, #tpu.memory_space<vmem>>, vector<1x4x256xf32>
    %5 = vector.shape_cast %4 : vector<1x4x256xf32> to vector<4x256xf32>
    %cst_7 = arith.constant dense<0.000000e+00> : vector<256xf32>
    %6 = vector.multi_reduction <add>, %5, %cst_7 [0] : vector<4x256xf32> to vector<256xf32>
    %7 = vector.shape_cast %6 : vector<256xf32> to vector<1x256xf32>
    %cst_8 = arith.constant dense<0xFF800000> : vector<256xf32>
    %8 = vector.multi_reduction <maximumf>, %5, %cst_8 [0] : vector<4x256xf32> to vector<256xf32>
    %9 = vector.shape_cast %8 : vector<256xf32> to vector<1x256xf32>
    %cst_9 = arith.constant 2.500000e-01 : f32
    %10 = vector.broadcast %cst_9 : f32 to vector<1x256xf32>
    %11 = arith.mulf %7, %10 : vector<1x256xf32>
    %c0_10 = arith.constant 0 : index
    %c51 = arith.constant 51 : index
    %12 = vector.load %arg4[%c0_10, %c51] : memref<1x358xf32, #tpu.memory_space<vmem>>, vector<1x256xf32>
    tpu.vector_store %arg4[%c0_10, %c51], %11 {strides = array<i32>} : memref<1x358xf32, #tpu.memory_space<vmem>>, vector<1x256xf32>,
    %c0_11 = arith.constant 0 : index
    %c51_12 = arith.constant 51 : index
    %13 = vector.load %arg5[%c0_11, %c51_12] : memref<1x358xf32, #tpu.memory_space<vmem>>, vector<1x256xf32>
    tpu.vector_store %arg5[%c0_11, %c51_12], %9 {strides = array<i32>} : memref<1x358xf32, #tpu.memory_space<vmem>>, vector<1x256xf32>,
    %14 = tpu.iota {dimensions = array<i32: 1>} : vector<1x352xi32>
    %c16_i32 = arith.constant 16 : i32
    %c0_i32 = arith.constant 0 : i32
    %15 = arith.cmpi eq, %c16_i32, %c0_i32 : i32
    %c1_i32 = arith.constant 1 : i32
    %16 = arith.select %15, %c1_i32, %c16_i32 : i32
    %17 = vector.broadcast %16 : i32 to vector<1x352xi32>
    %18 = arith.remsi %14, %17 : vector<1x352xi32>
    %c0_i32_13 = arith.constant 0 : i32
    %19 = vector.broadcast %c0_i32_13 : i32 to vector<1x352xi32>
    %20 = arith.cmpi ne, %18, %19 : vector<1x352xi32>
    %c0_i32_14 = arith.constant 0 : i32
    %21 = vector.broadcast %c0_i32_14 : i32 to vector<1x352xi32>
    %22 = arith.cmpi slt, %18, %21 : vector<1x352xi32>
    %c0_i32_15 = arith.constant 0 : i32
    %23 = arith.cmpi slt, %16, %c0_i32_15 : i32
    %24 = vector.broadcast %23 : i1 to vector<1x352xi1>
    %25 = vector.broadcast %24 : vector<1x352xi1> to vector<1x352xi1>
    %26 = arith.xori %22, %25 : vector<1x352xi1>
    %27 = arith.andi %26, %20 : vector<1x352xi1>
    %28 = vector.broadcast %16 : i32 to vector<1x352xi32>
    %29 = arith.addi %18, %28 : vector<1x352xi32>
    %30 = arith.select %27, %29, %18 : vector<1x352xi1>, vector<1x352xi32>
    %c-3_i32 = arith.constant -3 : i32
    %31 = vector.broadcast %c-3_i32 : i32 to vector<1x352xi32>
    %32 = arith.addi %30, %31 : vector<1x352xi32>
    %c0_i32_16 = arith.constant 0 : i32
    %33 = vector.broadcast %c0_i32_16 : i32 to vector<1x352xi32>
    %34 = arith.cmpi sge, %32, %33 : vector<1x352xi32>
    %c-3_i32_17 = arith.constant -3 : i32
    %35 = vector.broadcast %c-3_i32_17 : i32 to vector<1x352xi32>
    %36 = arith.addi %30, %35 : vector<1x352xi32>
    %c16_i32_18 = arith.constant 16 : i32
    %37 = vector.broadcast %c16_i32_18 : i32 to vector<1x352xi32>
    %38 = arith.cmpi slt, %36, %37 : vector<1x352xi32>
    %39 = arith.andi %34, %38 : vector<1x352xi1>
    %c-2_i32 = arith.constant -2 : i32
    %40 = vector.broadcast %c-2_i32 : i32 to vector<1x352xi32>
    %41 = arith.addi %30, %40 : vector<1x352xi32>
    %c0_i32_19 = arith.constant 0 : i32
    %42 = vector.broadcast %c0_i32_19 : i32 to vector<1x352xi32>
    %43 = arith.cmpi sge, %41, %42 : vector<1x352xi32>
    %c-2_i32_20 = arith.constant -2 : i32
    %44 = vector.broadcast %c-2_i32_20 : i32 to vector<1x352xi32>
    %45 = arith.addi %30, %44 : vector<1x352xi32>
    %c16_i32_21 = arith.constant 16 : i32
    %46 = vector.broadcast %c16_i32_21 : i32 to vector<1x352xi32>
    %47 = arith.cmpi slt, %45, %46 : vector<1x352xi32>
    %48 = arith.andi %43, %47 : vector<1x352xi1>
    %c-1_i32 = arith.constant -1 : i32
    %49 = vector.broadcast %c-1_i32 : i32 to vector<1x352xi32>
    %50 = arith.addi %30, %49 : vector<1x352xi32>
    %c0_i32_22 = arith.constant 0 : i32
    %51 = vector.broadcast %c0_i32_22 : i32 to vector<1x352xi32>
    %52 = arith.cmpi sge, %50, %51 : vector<1x352xi32>
    %c-1_i32_23 = arith.constant -1 : i32
    %53 = vector.broadcast %c-1_i32_23 : i32 to vector<1x352xi32>
    %54 = arith.addi %30, %53 : vector<1x352xi32>
    %c16_i32_24 = arith.constant 16 : i32
    %55 = vector.broadcast %c16_i32_24 : i32 to vector<1x352xi32>
    %56 = arith.cmpi slt, %54, %55 : vector<1x352xi32>
    %57 = arith.andi %52, %56 : vector<1x352xi1>
    %c0_i32_25 = arith.constant 0 : i32
    %58 = vector.broadcast %c0_i32_25 : i32 to vector<1x352xi32>
    %59 = arith.addi %30, %58 : vector<1x352xi32>
    %c0_i32_26 = arith.constant 0 : i32
    %60 = vector.broadcast %c0_i32_26 : i32 to vector<1x352xi32>
    %61 = arith.cmpi sge, %59, %60 : vector<1x352xi32>
    %c0_i32_27 = arith.constant 0 : i32
    %62 = vector.broadcast %c0_i32_27 : i32 to vector<1x352xi32>
    %63 = arith.addi %30, %62 : vector<1x352xi32>
    %c16_i32_28 = arith.constant 16 : i32
    %64 = vector.broadcast %c16_i32_28 : i32 to vector<1x352xi32>
    %65 = arith.cmpi slt, %63, %64 : vector<1x352xi32>
    %66 = arith.andi %61, %65 : vector<1x352xi1>
    %c1_i32_29 = arith.constant 1 : i32
    %67 = vector.broadcast %c1_i32_29 : i32 to vector<1x352xi32>
    %68 = arith.addi %30, %67 : vector<1x352xi32>
    %c0_i32_30 = arith.constant 0 : i32
    %69 = vector.broadcast %c0_i32_30 : i32 to vector<1x352xi32>
    %70 = arith.cmpi sge, %68, %69 : vector<1x352xi32>
    %c1_i32_31 = arith.constant 1 : i32
    %71 = vector.broadcast %c1_i32_31 : i32 to vector<1x352xi32>
    %72 = arith.addi %30, %71 : vector<1x352xi32>
    %c16_i32_32 = arith.constant 16 : i32
    %73 = vector.broadcast %c16_i32_32 : i32 to vector<1x352xi32>
    %74 = arith.cmpi slt, %72, %73 : vector<1x352xi32>
    %75 = arith.andi %70, %74 : vector<1x352xi1>
    %c2_i32 = arith.constant 2 : i32
    %76 = vector.broadcast %c2_i32 : i32 to vector<1x352xi32>
    %77 = arith.addi %30, %76 : vector<1x352xi32>
    %c0_i32_33 = arith.constant 0 : i32
    %78 = vector.broadcast %c0_i32_33 : i32 to vector<1x352xi32>
    %79 = arith.cmpi sge, %77, %78 : vector<1x352xi32>
    %c2_i32_34 = arith.constant 2 : i32
    %80 = vector.broadcast %c2_i32_34 : i32 to vector<1x352xi32>
    %81 = arith.addi %30, %80 : vector<1x352xi32>
    %c16_i32_35 = arith.constant 16 : i32
    %82 = vector.broadcast %c16_i32_35 : i32 to vector<1x352xi32>
    %83 = arith.cmpi slt, %81, %82 : vector<1x352xi32>
    %84 = arith.andi %79, %83 : vector<1x352xi1>
    %c3_i32 = arith.constant 3 : i32
    %85 = vector.broadcast %c3_i32 : i32 to vector<1x352xi32>
    %86 = arith.addi %30, %85 : vector<1x352xi32>
    %c0_i32_36 = arith.constant 0 : i32
    %87 = vector.broadcast %c0_i32_36 : i32 to vector<1x352xi32>
    %88 = arith.cmpi sge, %86, %87 : vector<1x352xi32>
    %c3_i32_37 = arith.constant 3 : i32
    %89 = vector.broadcast %c3_i32_37 : i32 to vector<1x352xi32>
    %90 = arith.addi %30, %89 : vector<1x352xi32>
    %c16_i32_38 = arith.constant 16 : i32
    %91 = vector.broadcast %c16_i32_38 : i32 to vector<1x352xi32>
    %92 = arith.cmpi slt, %90, %91 : vector<1x352xi32>
    %93 = arith.andi %88, %92 : vector<1x352xi1>
    %c0_39 = arith.constant 0 : index
    %94 = memref.load %arg1[%c0_39] : memref<98xf32, #tpu.memory_space<smem>>
    %c1 = arith.constant 1 : index
    %95 = memref.load %arg1[%c1] : memref<98xf32, #tpu.memory_space<smem>>
    %c2 = arith.constant 2 : index
    %96 = memref.load %arg1[%c2] : memref<98xf32, #tpu.memory_space<smem>>
    %c3 = arith.constant 3 : index
    %97 = memref.load %arg1[%c3] : memref<98xf32, #tpu.memory_space<smem>>
    %c4 = arith.constant 4 : index
    %98 = memref.load %arg1[%c4] : memref<98xf32, #tpu.memory_space<smem>>
    %c5 = arith.constant 5 : index
    %99 = memref.load %arg1[%c5] : memref<98xf32, #tpu.memory_space<smem>>
    %c6 = arith.constant 6 : index
    %100 = memref.load %arg1[%c6] : memref<98xf32, #tpu.memory_space<smem>>
    %c7 = arith.constant 7 : index
    %101 = memref.load %arg1[%c7] : memref<98xf32, #tpu.memory_space<smem>>
    %c8 = arith.constant 8 : index
    %102 = memref.load %arg1[%c8] : memref<98xf32, #tpu.memory_space<smem>>
    %c9 = arith.constant 9 : index
    %103 = memref.load %arg1[%c9] : memref<98xf32, #tpu.memory_space<smem>>
    %c10 = arith.constant 10 : index
    %104 = memref.load %arg1[%c10] : memref<98xf32, #tpu.memory_space<smem>>
    %c11 = arith.constant 11 : index
    %105 = memref.load %arg1[%c11] : memref<98xf32, #tpu.memory_space<smem>>
    %c12 = arith.constant 12 : index
    %106 = memref.load %arg1[%c12] : memref<98xf32, #tpu.memory_space<smem>>
    %c13 = arith.constant 13 : index
    %107 = memref.load %arg1[%c13] : memref<98xf32, #tpu.memory_space<smem>>
    %c14 = arith.constant 14 : index
    %108 = memref.load %arg1[%c14] : memref<98xf32, #tpu.memory_space<smem>>
    %c15 = arith.constant 15 : index
    %109 = memref.load %arg1[%c15] : memref<98xf32, #tpu.memory_space<smem>>
    %c16 = arith.constant 16 : index
    %110 = memref.load %arg1[%c16] : memref<98xf32, #tpu.memory_space<smem>>
    %c17 = arith.constant 17 : index
    %111 = memref.load %arg1[%c17] : memref<98xf32, #tpu.memory_space<smem>>
    %c18 = arith.constant 18 : index
    %112 = memref.load %arg1[%c18] : memref<98xf32, #tpu.memory_space<smem>>
    %c19 = arith.constant 19 : index
    %113 = memref.load %arg1[%c19] : memref<98xf32, #tpu.memory_space<smem>>
    %c20 = arith.constant 20 : index
    %114 = memref.load %arg1[%c20] : memref<98xf32, #tpu.memory_space<smem>>
    %c21 = arith.constant 21 : index
    %115 = memref.load %arg1[%c21] : memref<98xf32, #tpu.memory_space<smem>>
    %c22 = arith.constant 22 : index
    %116 = memref.load %arg1[%c22] : memref<98xf32, #tpu.memory_space<smem>>
    %c23 = arith.constant 23 : index
    %117 = memref.load %arg1[%c23] : memref<98xf32, #tpu.memory_space<smem>>
    %c24 = arith.constant 24 : index
    %118 = memref.load %arg1[%c24] : memref<98xf32, #tpu.memory_space<smem>>
    %c25 = arith.constant 25 : index
    %119 = memref.load %arg1[%c25] : memref<98xf32, #tpu.memory_space<smem>>
    %c26 = arith.constant 26 : index
    %120 = memref.load %arg1[%c26] : memref<98xf32, #tpu.memory_space<smem>>
    %c27 = arith.constant 27 : index
    %121 = memref.load %arg1[%c27] : memref<98xf32, #tpu.memory_space<smem>>
    %c28 = arith.constant 28 : index
    %122 = memref.load %arg1[%c28] : memref<98xf32, #tpu.memory_space<smem>>
    %c29 = arith.constant 29 : index
    %123 = memref.load %arg1[%c29] : memref<98xf32, #tpu.memory_space<smem>>
    %c30 = arith.constant 30 : index
    %124 = memref.load %arg1[%c30] : memref<98xf32, #tpu.memory_space<smem>>
    %c31 = arith.constant 31 : index
    %125 = memref.load %arg1[%c31] : memref<98xf32, #tpu.memory_space<smem>>
    %c32 = arith.constant 32 : index
    %126 = memref.load %arg1[%c32] : memref<98xf32, #tpu.memory_space<smem>>
    %c33 = arith.constant 33 : index
    %127 = memref.load %arg1[%c33] : memref<98xf32, #tpu.memory_space<smem>>
    %c34 = arith.constant 34 : index
    %128 = memref.load %arg1[%c34] : memref<98xf32, #tpu.memory_space<smem>>
    %c35 = arith.constant 35 : index
    %129 = memref.load %arg1[%c35] : memref<98xf32, #tpu.memory_space<smem>>
    %c36 = arith.constant 36 : index
    %130 = memref.load %arg1[%c36] : memref<98xf32, #tpu.memory_space<smem>>
    %c37 = arith.constant 37 : index
    %131 = memref.load %arg1[%c37] : memref<98xf32, #tpu.memory_space<smem>>
    %c38 = arith.constant 38 : index
    %132 = memref.load %arg1[%c38] : memref<98xf32, #tpu.memory_space<smem>>
    %c39 = arith.constant 39 : index
    %133 = memref.load %arg1[%c39] : memref<98xf32, #tpu.memory_space<smem>>
    %c40 = arith.constant 40 : index
    %134 = memref.load %arg1[%c40] : memref<98xf32, #tpu.memory_space<smem>>
    %c41 = arith.constant 41 : index
    %135 = memref.load %arg1[%c41] : memref<98xf32, #tpu.memory_space<smem>>
    %c42 = arith.constant 42 : index
    %136 = memref.load %arg1[%c42] : memref<98xf32, #tpu.memory_space<smem>>
    %c43 = arith.constant 43 : index
    %137 = memref.load %arg1[%c43] : memref<98xf32, #tpu.memory_space<smem>>
    %c44 = arith.constant 44 : index
    %138 = memref.load %arg1[%c44] : memref<98xf32, #tpu.memory_space<smem>>
    %c45 = arith.constant 45 : index
    %139 = memref.load %arg1[%c45] : memref<98xf32, #tpu.memory_space<smem>>
    %c46 = arith.constant 46 : index
    %140 = memref.load %arg1[%c46] : memref<98xf32, #tpu.memory_space<smem>>
    %c47 = arith.constant 47 : index
    %141 = memref.load %arg1[%c47] : memref<98xf32, #tpu.memory_space<smem>>
    %c48 = arith.constant 48 : index
    %142 = memref.load %arg1[%c48] : memref<98xf32, #tpu.memory_space<smem>>
    %c49 = arith.constant 49 : index
    %143 = memref.load %arg1[%c49] : memref<98xf32, #tpu.memory_space<smem>>
    %c50 = arith.constant 50 : index
    %144 = memref.load %arg1[%c50] : memref<98xf32, #tpu.memory_space<smem>>
    %c51_40 = arith.constant 51 : index
    %145 = memref.load %arg1[%c51_40] : memref<98xf32, #tpu.memory_space<smem>>
    %c52 = arith.constant 52 : index
    %146 = memref.load %arg1[%c52] : memref<98xf32, #tpu.memory_space<smem>>
    %c53 = arith.constant 53 : index
    %147 = memref.load %arg1[%c53] : memref<98xf32, #tpu.memory_space<smem>>
    %c54 = arith.constant 54 : index
    %148 = memref.load %arg1[%c54] : memref<98xf32, #tpu.memory_space<smem>>
    %c55 = arith.constant 55 : index
    %149 = memref.load %arg1[%c55] : memref<98xf32, #tpu.memory_space<smem>>
    %c56 = arith.constant 56 : index
    %150 = memref.load %arg1[%c56] : memref<98xf32, #tpu.memory_space<smem>>
    %c57 = arith.constant 57 : index
    %151 = memref.load %arg1[%c57] : memref<98xf32, #tpu.memory_space<smem>>
    %c58 = arith.constant 58 : index
    %152 = memref.load %arg1[%c58] : memref<98xf32, #tpu.memory_space<smem>>
    %c59 = arith.constant 59 : index
    %153 = memref.load %arg1[%c59] : memref<98xf32, #tpu.memory_space<smem>>
    %c60 = arith.constant 60 : index
    %154 = memref.load %arg1[%c60] : memref<98xf32, #tpu.memory_space<smem>>
    %c61 = arith.constant 61 : index
    %155 = memref.load %arg1[%c61] : memref<98xf32, #tpu.memory_space<smem>>
    %c62 = arith.constant 62 : index
    %156 = memref.load %arg1[%c62] : memref<98xf32, #tpu.memory_space<smem>>
    %c63 = arith.constant 63 : index
    %157 = memref.load %arg1[%c63] : memref<98xf32, #tpu.memory_space<smem>>
    %c64 = arith.constant 64 : index
    %158 = memref.load %arg1[%c64] : memref<98xf32, #tpu.memory_space<smem>>
    %c65 = arith.constant 65 : index
    %159 = memref.load %arg1[%c65] : memref<98xf32, #tpu.memory_space<smem>>
    %c66 = arith.constant 66 : index
    %160 = memref.load %arg1[%c66] : memref<98xf32, #tpu.memory_space<smem>>
    %c67 = arith.constant 67 : index
    %161 = memref.load %arg1[%c67] : memref<98xf32, #tpu.memory_space<smem>>
    %c68 = arith.constant 68 : index
    %162 = memref.load %arg1[%c68] : memref<98xf32, #tpu.memory_space<smem>>
    %c69 = arith.constant 69 : index
    %163 = memref.load %arg1[%c69] : memref<98xf32, #tpu.memory_space<smem>>
    %c70 = arith.constant 70 : index
    %164 = memref.load %arg1[%c70] : memref<98xf32, #tpu.memory_space<smem>>
    %c71 = arith.constant 71 : index
    %165 = memref.load %arg1[%c71] : memref<98xf32, #tpu.memory_space<smem>>
    %c72 = arith.constant 72 : index
    %166 = memref.load %arg1[%c72] : memref<98xf32, #tpu.memory_space<smem>>
    %c73 = arith.constant 73 : index
    %167 = memref.load %arg1[%c73] : memref<98xf32, #tpu.memory_space<smem>>
    %c74 = arith.constant 74 : index
    %168 = memref.load %arg1[%c74] : memref<98xf32, #tpu.memory_space<smem>>
    %c75 = arith.constant 75 : index
    %169 = memref.load %arg1[%c75] : memref<98xf32, #tpu.memory_space<smem>>
    %c76 = arith.constant 76 : index
    %170 = memref.load %arg1[%c76] : memref<98xf32, #tpu.memory_space<smem>>
    %c77 = arith.constant 77 : index
    %171 = memref.load %arg1[%c77] : memref<98xf32, #tpu.memory_space<smem>>
    %c78 = arith.constant 78 : index
    %172 = memref.load %arg1[%c78] : memref<98xf32, #tpu.memory_space<smem>>
    %c79 = arith.constant 79 : index
    %173 = memref.load %arg1[%c79] : memref<98xf32, #tpu.memory_space<smem>>
    %c80 = arith.constant 80 : index
    %174 = memref.load %arg1[%c80] : memref<98xf32, #tpu.memory_space<smem>>
    %c81 = arith.constant 81 : index
    %175 = memref.load %arg1[%c81] : memref<98xf32, #tpu.memory_space<smem>>
    %c82 = arith.constant 82 : index
    %176 = memref.load %arg1[%c82] : memref<98xf32, #tpu.memory_space<smem>>
    %c83 = arith.constant 83 : index
    %177 = memref.load %arg1[%c83] : memref<98xf32, #tpu.memory_space<smem>>
    %c84 = arith.constant 84 : index
    %178 = memref.load %arg1[%c84] : memref<98xf32, #tpu.memory_space<smem>>
    %c85 = arith.constant 85 : index
    %179 = memref.load %arg1[%c85] : memref<98xf32, #tpu.memory_space<smem>>
    %c86 = arith.constant 86 : index
    %180 = memref.load %arg1[%c86] : memref<98xf32, #tpu.memory_space<smem>>
    %c87 = arith.constant 87 : index
    %181 = memref.load %arg1[%c87] : memref<98xf32, #tpu.memory_space<smem>>
    %c88 = arith.constant 88 : index
    %182 = memref.load %arg1[%c88] : memref<98xf32, #tpu.memory_space<smem>>
    %c89 = arith.constant 89 : index
    %183 = memref.load %arg1[%c89] : memref<98xf32, #tpu.memory_space<smem>>
    %c90 = arith.constant 90 : index
    %184 = memref.load %arg1[%c90] : memref<98xf32, #tpu.memory_space<smem>>
    %c91 = arith.constant 91 : index
    %185 = memref.load %arg1[%c91] : memref<98xf32, #tpu.memory_space<smem>>
    %c92 = arith.constant 92 : index
    %186 = memref.load %arg1[%c92] : memref<98xf32, #tpu.memory_space<smem>>
    %c93 = arith.constant 93 : index
    %187 = memref.load %arg1[%c93] : memref<98xf32, #tpu.memory_space<smem>>
    %c94 = arith.constant 94 : index
    %188 = memref.load %arg1[%c94] : memref<98xf32, #tpu.memory_space<smem>>
    %c95 = arith.constant 95 : index
    %189 = memref.load %arg1[%c95] : memref<98xf32, #tpu.memory_space<smem>>
    %c96 = arith.constant 96 : index
    %190 = memref.load %arg1[%c96] : memref<98xf32, #tpu.memory_space<smem>>
    %c97 = arith.constant 97 : index
    %191 = memref.load %arg1[%c97] : memref<98xf32, #tpu.memory_space<smem>>
    %c0_41 = arith.constant 0 : index
    %c0_42 = arith.constant 0 : index
    %192 = vector.load %arg4[%c0_41, %c0_42] : memref<1x358xf32, #tpu.memory_space<vmem>>, vector<1x352xf32>
    %cst_43 = arith.constant 0.000000e+00 : f32
    %193 = vector.broadcast %cst_43 : f32 to vector<1x352xf32>
    %194 = arith.select %39, %192, %193 : vector<1x352xi1>, vector<1x352xf32>
    %c0_44 = arith.constant 0 : index
    %c1_45 = arith.constant 1 : index
    %195 = vector.load %arg4[%c0_44, %c1_45] : memref<1x358xf32, #tpu.memory_space<vmem>>, vector<1x352xf32>
    %cst_46 = arith.constant 0.000000e+00 : f32
    %196 = vector.broadcast %cst_46 : f32 to vector<1x352xf32>
    %197 = arith.select %48, %195, %196 : vector<1x352xi1>, vector<1x352xf32>
    %c0_47 = arith.constant 0 : index
    %c2_48 = arith.constant 2 : index
    %198 = vector.load %arg4[%c0_47, %c2_48] : memref<1x358xf32, #tpu.memory_space<vmem>>, vector<1x352xf32>
    %cst_49 = arith.constant 0.000000e+00 : f32
    %199 = vector.broadcast %cst_49 : f32 to vector<1x352xf32>
    %200 = arith.select %57, %198, %199 : vector<1x352xi1>, vector<1x352xf32>
    %c0_50 = arith.constant 0 : index
    %c3_51 = arith.constant 3 : index
    %201 = vector.load %arg4[%c0_50, %c3_51] : memref<1x358xf32, #tpu.memory_space<vmem>>, vector<1x352xf32>
    %cst_52 = arith.constant 0.000000e+00 : f32
    %202 = vector.broadcast %cst_52 : f32 to vector<1x352xf32>
    %203 = arith.select %66, %201, %202 : vector<1x352xi1>, vector<1x352xf32>
    %c0_53 = arith.constant 0 : index
    %c4_54 = arith.constant 4 : index
    %204 = vector.load %arg4[%c0_53, %c4_54] : memref<1x358xf32, #tpu.memory_space<vmem>>, vector<1x352xf32>
    %cst_55 = arith.constant 0.000000e+00 : f32
    %205 = vector.broadcast %cst_55 : f32 to vector<1x352xf32>
    %206 = arith.select %75, %204, %205 : vector<1x352xi1>, vector<1x352xf32>
    %c0_56 = arith.constant 0 : index
    %c5_57 = arith.constant 5 : index
    %207 = vector.load %arg4[%c0_56, %c5_57] : memref<1x358xf32, #tpu.memory_space<vmem>>, vector<1x352xf32>
    %cst_58 = arith.constant 0.000000e+00 : f32
    %208 = vector.broadcast %cst_58 : f32 to vector<1x352xf32>
    %209 = arith.select %84, %207, %208 : vector<1x352xi1>, vector<1x352xf32>
    %c0_59 = arith.constant 0 : index
    %c6_60 = arith.constant 6 : index
    %210 = vector.load %arg4[%c0_59, %c6_60] : memref<1x358xf32, #tpu.memory_space<vmem>>, vector<1x352xf32>
    %cst_61 = arith.constant 0.000000e+00 : f32
    %211 = vector.broadcast %cst_61 : f32 to vector<1x352xf32>
    %212 = arith.select %93, %210, %211 : vector<1x352xi1>, vector<1x352xf32>
    %213 = vector.broadcast %94 : f32 to vector<1x352xf32>
    %214 = arith.mulf %194, %213 : vector<1x352xf32>
    %215 = vector.broadcast %95 : f32 to vector<1x352xf32>
    %216 = arith.mulf %197, %215 : vector<1x352xf32>
    %217 = arith.addf %214, %216 : vector<1x352xf32>
    %218 = vector.broadcast %96 : f32 to vector<1x352xf32>
    %219 = arith.mulf %200, %218 : vector<1x352xf32>
    %220 = arith.addf %217, %219 : vector<1x352xf32>
    %221 = vector.broadcast %97 : f32 to vector<1x352xf32>
    %222 = arith.mulf %203, %221 : vector<1x352xf32>
    %223 = arith.addf %220, %222 : vector<1x352xf32>
    %224 = vector.broadcast %98 : f32 to vector<1x352xf32>
    %225 = arith.mulf %206, %224 : vector<1x352xf32>
    %226 = arith.addf %223, %225 : vector<1x352xf32>
    %227 = vector.broadcast %99 : f32 to vector<1x352xf32>
    %228 = arith.mulf %209, %227 : vector<1x352xf32>
    %229 = arith.addf %226, %228 : vector<1x352xf32>
    %230 = vector.broadcast %100 : f32 to vector<1x352xf32>
    %231 = arith.mulf %212, %230 : vector<1x352xf32>
    %232 = arith.addf %229, %231 : vector<1x352xf32>
    %233 = vector.extract_strided_slice %232 {offsets = [0, 0], sizes = [1, 256], strides = [1, 1]} : vector<1x352xf32> to vector<1x256xf32>
    %234 = vector.broadcast %101 : f32 to vector<1x352xf32>
    %235 = arith.mulf %194, %234 : vector<1x352xf32>
    %236 = vector.broadcast %102 : f32 to vector<1x352xf32>
    %237 = arith.mulf %197, %236 : vector<1x352xf32>
    %238 = arith.addf %235, %237 : vector<1x352xf32>
    %239 = vector.broadcast %103 : f32 to vector<1x352xf32>
    %240 = arith.mulf %200, %239 : vector<1x352xf32>
    %241 = arith.addf %238, %240 : vector<1x352xf32>
    %242 = vector.broadcast %104 : f32 to vector<1x352xf32>
    %243 = arith.mulf %203, %242 : vector<1x352xf32>
    %244 = arith.addf %241, %243 : vector<1x352xf32>
    %245 = vector.broadcast %105 : f32 to vector<1x352xf32>
    %246 = arith.mulf %206, %245 : vector<1x352xf32>
    %247 = arith.addf %244, %246 : vector<1x352xf32>
    %248 = vector.broadcast %106 : f32 to vector<1x352xf32>
    %249 = arith.mulf %209, %248 : vector<1x352xf32>
    %250 = arith.addf %247, %249 : vector<1x352xf32>
    %251 = vector.broadcast %107 : f32 to vector<1x352xf32>
    %252 = arith.mulf %212, %251 : vector<1x352xf32>
    %253 = arith.addf %250, %252 : vector<1x352xf32>
    %254 = vector.extract_strided_slice %253 {offsets = [0, 16], sizes = [1, 256], strides = [1, 1]} : vector<1x352xf32> to vector<1x256xf32>
    %255 = vector.broadcast %108 : f32 to vector<1x352xf32>
    %256 = arith.mulf %194, %255 : vector<1x352xf32>
    %257 = vector.broadcast %109 : f32 to vector<1x352xf32>
    %258 = arith.mulf %197, %257 : vector<1x352xf32>
    %259 = arith.addf %256, %258 : vector<1x352xf32>
    %260 = vector.broadcast %110 : f32 to vector<1x352xf32>
    %261 = arith.mulf %200, %260 : vector<1x352xf32>
    %262 = arith.addf %259, %261 : vector<1x352xf32>
    %263 = vector.broadcast %111 : f32 to vector<1x352xf32>
    %264 = arith.mulf %203, %263 : vector<1x352xf32>
    %265 = arith.addf %262, %264 : vector<1x352xf32>
    %266 = vector.broadcast %112 : f32 to vector<1x352xf32>
    %267 = arith.mulf %206, %266 : vector<1x352xf32>
    %268 = arith.addf %265, %267 : vector<1x352xf32>
    %269 = vector.broadcast %113 : f32 to vector<1x352xf32>
    %270 = arith.mulf %209, %269 : vector<1x352xf32>
    %271 = arith.addf %268, %270 : vector<1x352xf32>
    %272 = vector.broadcast %114 : f32 to vector<1x352xf32>
    %273 = arith.mulf %212, %272 : vector<1x352xf32>
    %274 = arith.addf %271, %273 : vector<1x352xf32>
    %275 = vector.extract_strided_slice %274 {offsets = [0, 32], sizes = [1, 256], strides = [1, 1]} : vector<1x352xf32> to vector<1x256xf32>
    %276 = vector.broadcast %115 : f32 to vector<1x352xf32>
    %277 = arith.mulf %194, %276 : vector<1x352xf32>
    %278 = vector.broadcast %116 : f32 to vector<1x352xf32>
    %279 = arith.mulf %197, %278 : vector<1x352xf32>
    %280 = arith.addf %277, %279 : vector<1x352xf32>
    %281 = vector.broadcast %117 : f32 to vector<1x352xf32>
    %282 = arith.mulf %200, %281 : vector<1x352xf32>
    %283 = arith.addf %280, %282 : vector<1x352xf32>
    %284 = vector.broadcast %118 : f32 to vector<1x352xf32>
    %285 = arith.mulf %203, %284 : vector<1x352xf32>
    %286 = arith.addf %283, %285 : vector<1x352xf32>
    %287 = vector.broadcast %119 : f32 to vector<1x352xf32>
    %288 = arith.mulf %206, %287 : vector<1x352xf32>
    %289 = arith.addf %286, %288 : vector<1x352xf32>
    %290 = vector.broadcast %120 : f32 to vector<1x352xf32>
    %291 = arith.mulf %209, %290 : vector<1x352xf32>
    %292 = arith.addf %289, %291 : vector<1x352xf32>
    %293 = vector.broadcast %121 : f32 to vector<1x352xf32>
    %294 = arith.mulf %212, %293 : vector<1x352xf32>
    %295 = arith.addf %292, %294 : vector<1x352xf32>
    %296 = vector.extract_strided_slice %295 {offsets = [0, 48], sizes = [1, 256], strides = [1, 1]} : vector<1x352xf32> to vector<1x256xf32>
    %297 = vector.broadcast %122 : f32 to vector<1x352xf32>
    %298 = arith.mulf %194, %297 : vector<1x352xf32>
    %299 = vector.broadcast %123 : f32 to vector<1x352xf32>
    %300 = arith.mulf %197, %299 : vector<1x352xf32>
    %301 = arith.addf %298, %300 : vector<1x352xf32>
    %302 = vector.broadcast %124 : f32 to vector<1x352xf32>
    %303 = arith.mulf %200, %302 : vector<1x352xf32>
    %304 = arith.addf %301, %303 : vector<1x352xf32>
    %305 = vector.broadcast %125 : f32 to vector<1x352xf32>
    %306 = arith.mulf %203, %305 : vector<1x352xf32>
    %307 = arith.addf %304, %306 : vector<1x352xf32>
    %308 = vector.broadcast %126 : f32 to vector<1x352xf32>
    %309 = arith.mulf %206, %308 : vector<1x352xf32>
    %310 = arith.addf %307, %309 : vector<1x352xf32>
    %311 = vector.broadcast %127 : f32 to vector<1x352xf32>
    %312 = arith.mulf %209, %311 : vector<1x352xf32>
    %313 = arith.addf %310, %312 : vector<1x352xf32>
    %314 = vector.broadcast %128 : f32 to vector<1x352xf32>
    %315 = arith.mulf %212, %314 : vector<1x352xf32>
    %316 = arith.addf %313, %315 : vector<1x352xf32>
    %317 = vector.extract_strided_slice %316 {offsets = [0, 64], sizes = [1, 256], strides = [1, 1]} : vector<1x352xf32> to vector<1x256xf32>
    %318 = vector.broadcast %129 : f32 to vector<1x352xf32>
    %319 = arith.mulf %194, %318 : vector<1x352xf32>
    %320 = vector.broadcast %130 : f32 to vector<1x352xf32>
    %321 = arith.mulf %197, %320 : vector<1x352xf32>
    %322 = arith.addf %319, %321 : vector<1x352xf32>
    %323 = vector.broadcast %131 : f32 to vector<1x352xf32>
    %324 = arith.mulf %200, %323 : vector<1x352xf32>
    %325 = arith.addf %322, %324 : vector<1x352xf32>
    %326 = vector.broadcast %132 : f32 to vector<1x352xf32>
    %327 = arith.mulf %203, %326 : vector<1x352xf32>
    %328 = arith.addf %325, %327 : vector<1x352xf32>
    %329 = vector.broadcast %133 : f32 to vector<1x352xf32>
    %330 = arith.mulf %206, %329 : vector<1x352xf32>
    %331 = arith.addf %328, %330 : vector<1x352xf32>
    %332 = vector.broadcast %134 : f32 to vector<1x352xf32>
    %333 = arith.mulf %209, %332 : vector<1x352xf32>
    %334 = arith.addf %331, %333 : vector<1x352xf32>
    %335 = vector.broadcast %135 : f32 to vector<1x352xf32>
    %336 = arith.mulf %212, %335 : vector<1x352xf32>
    %337 = arith.addf %334, %336 : vector<1x352xf32>
    %338 = vector.extract_strided_slice %337 {offsets = [0, 80], sizes = [1, 256], strides = [1, 1]} : vector<1x352xf32> to vector<1x256xf32>
    %339 = vector.broadcast %136 : f32 to vector<1x352xf32>
    %340 = arith.mulf %194, %339 : vector<1x352xf32>
    %341 = vector.broadcast %137 : f32 to vector<1x352xf32>
    %342 = arith.mulf %197, %341 : vector<1x352xf32>
    %343 = arith.addf %340, %342 : vector<1x352xf32>
    %344 = vector.broadcast %138 : f32 to vector<1x352xf32>
    %345 = arith.mulf %200, %344 : vector<1x352xf32>
    %346 = arith.addf %343, %345 : vector<1x352xf32>
    %347 = vector.broadcast %139 : f32 to vector<1x352xf32>
    %348 = arith.mulf %203, %347 : vector<1x352xf32>
    %349 = arith.addf %346, %348 : vector<1x352xf32>
    %350 = vector.broadcast %140 : f32 to vector<1x352xf32>
    %351 = arith.mulf %206, %350 : vector<1x352xf32>
    %352 = arith.addf %349, %351 : vector<1x352xf32>
    %353 = vector.broadcast %141 : f32 to vector<1x352xf32>
    %354 = arith.mulf %209, %353 : vector<1x352xf32>
    %355 = arith.addf %352, %354 : vector<1x352xf32>
    %356 = vector.broadcast %142 : f32 to vector<1x352xf32>
    %357 = arith.mulf %212, %356 : vector<1x352xf32>
    %358 = arith.addf %355, %357 : vector<1x352xf32>
    %359 = vector.extract_strided_slice %358 {offsets = [0, 96], sizes = [1, 256], strides = [1, 1]} : vector<1x352xf32> to vector<1x256xf32>
    %360 = arith.addf %233, %254 : vector<1x256xf32>
    %361 = arith.addf %275, %296 : vector<1x256xf32>
    %362 = arith.addf %317, %338 : vector<1x256xf32>
    %363 = arith.addf %360, %361 : vector<1x256xf32>
    %364 = arith.addf %362, %359 : vector<1x256xf32>
    %365 = arith.addf %363, %364 : vector<1x256xf32>
    %c0_62 = arith.constant 0 : index
    %c0_63 = arith.constant 0 : index
    %366 = vector.load %arg5[%c0_62, %c0_63] : memref<1x358xf32, #tpu.memory_space<vmem>>, vector<1x352xf32>
    %cst_64 = arith.constant 0.000000e+00 : f32
    %367 = vector.broadcast %cst_64 : f32 to vector<1x352xf32>
    %368 = arith.select %39, %366, %367 : vector<1x352xi1>, vector<1x352xf32>
    %c0_65 = arith.constant 0 : index
    %c1_66 = arith.constant 1 : index
    %369 = vector.load %arg5[%c0_65, %c1_66] : memref<1x358xf32, #tpu.memory_space<vmem>>, vector<1x352xf32>
    %cst_67 = arith.constant 0.000000e+00 : f32
    %370 = vector.broadcast %cst_67 : f32 to vector<1x352xf32>
    %371 = arith.select %48, %369, %370 : vector<1x352xi1>, vector<1x352xf32>
    %c0_68 = arith.constant 0 : index
    %c2_69 = arith.constant 2 : index
    %372 = vector.load %arg5[%c0_68, %c2_69] : memref<1x358xf32, #tpu.memory_space<vmem>>, vector<1x352xf32>
    %cst_70 = arith.constant 0.000000e+00 : f32
    %373 = vector.broadcast %cst_70 : f32 to vector<1x352xf32>
    %374 = arith.select %57, %372, %373 : vector<1x352xi1>, vector<1x352xf32>
    %c0_71 = arith.constant 0 : index
    %c3_72 = arith.constant 3 : index
    %375 = vector.load %arg5[%c0_71, %c3_72] : memref<1x358xf32, #tpu.memory_space<vmem>>, vector<1x352xf32>
    %cst_73 = arith.constant 0.000000e+00 : f32
    %376 = vector.broadcast %cst_73 : f32 to vector<1x352xf32>
    %377 = arith.select %66, %375, %376 : vector<1x352xi1>, vector<1x352xf32>
    %c0_74 = arith.constant 0 : index
    %c4_75 = arith.constant 4 : index
    %378 = vector.load %arg5[%c0_74, %c4_75] : memref<1x358xf32, #tpu.memory_space<vmem>>, vector<1x352xf32>
    %cst_76 = arith.constant 0.000000e+00 : f32
    %379 = vector.broadcast %cst_76 : f32 to vector<1x352xf32>
    %380 = arith.select %75, %378, %379 : vector<1x352xi1>, vector<1x352xf32>
    %c0_77 = arith.constant 0 : index
    %c5_78 = arith.constant 5 : index
    %381 = vector.load %arg5[%c0_77, %c5_78] : memref<1x358xf32, #tpu.memory_space<vmem>>, vector<1x352xf32>
    %cst_79 = arith.constant 0.000000e+00 : f32
    %382 = vector.broadcast %cst_79 : f32 to vector<1x352xf32>
    %383 = arith.select %84, %381, %382 : vector<1x352xi1>, vector<1x352xf32>
    %c0_80 = arith.constant 0 : index
    %c6_81 = arith.constant 6 : index
    %384 = vector.load %arg5[%c0_80, %c6_81] : memref<1x358xf32, #tpu.memory_space<vmem>>, vector<1x352xf32>
    %cst_82 = arith.constant 0.000000e+00 : f32
    %385 = vector.broadcast %cst_82 : f32 to vector<1x352xf32>
    %386 = arith.select %93, %384, %385 : vector<1x352xi1>, vector<1x352xf32>
    %387 = vector.broadcast %143 : f32 to vector<1x352xf32>
    %388 = arith.mulf %368, %387 : vector<1x352xf32>
    %389 = vector.broadcast %144 : f32 to vector<1x352xf32>
    %390 = arith.mulf %371, %389 : vector<1x352xf32>
    %391 = arith.addf %388, %390 : vector<1x352xf32>
    %392 = vector.broadcast %145 : f32 to vector<1x352xf32>
    %393 = arith.mulf %374, %392 : vector<1x352xf32>
    %394 = arith.addf %391, %393 : vector<1x352xf32>
    %395 = vector.broadcast %146 : f32 to vector<1x352xf32>
    %396 = arith.mulf %377, %395 : vector<1x352xf32>
    %397 = arith.addf %394, %396 : vector<1x352xf32>
    %398 = vector.broadcast %147 : f32 to vector<1x352xf32>
    %399 = arith.mulf %380, %398 : vector<1x352xf32>
    %400 = arith.addf %397, %399 : vector<1x352xf32>
    %401 = vector.broadcast %148 : f32 to vector<1x352xf32>
    %402 = arith.mulf %383, %401 : vector<1x352xf32>
    %403 = arith.addf %400, %402 : vector<1x352xf32>
    %404 = vector.broadcast %149 : f32 to vector<1x352xf32>
    %405 = arith.mulf %386, %404 : vector<1x352xf32>
    %406 = arith.addf %403, %405 : vector<1x352xf32>
    %407 = vector.extract_strided_slice %406 {offsets = [0, 0], sizes = [1, 256], strides = [1, 1]} : vector<1x352xf32> to vector<1x256xf32>
    %408 = vector.broadcast %150 : f32 to vector<1x352xf32>
    %409 = arith.mulf %368, %408 : vector<1x352xf32>
    %410 = vector.broadcast %151 : f32 to vector<1x352xf32>
    %411 = arith.mulf %371, %410 : vector<1x352xf32>
    %412 = arith.addf %409, %411 : vector<1x352xf32>
    %413 = vector.broadcast %152 : f32 to vector<1x352xf32>
    %414 = arith.mulf %374, %413 : vector<1x352xf32>
    %415 = arith.addf %412, %414 : vector<1x352xf32>
    %416 = vector.broadcast %153 : f32 to vector<1x352xf32>
    %417 = arith.mulf %377, %416 : vector<1x352xf32>
    %418 = arith.addf %415, %417 : vector<1x352xf32>
    %419 = vector.broadcast %154 : f32 to vector<1x352xf32>
    %420 = arith.mulf %380, %419 : vector<1x352xf32>
    %421 = arith.addf %418, %420 : vector<1x352xf32>
    %422 = vector.broadcast %155 : f32 to vector<1x352xf32>
    %423 = arith.mulf %383, %422 : vector<1x352xf32>
    %424 = arith.addf %421, %423 : vector<1x352xf32>
    %425 = vector.broadcast %156 : f32 to vector<1x352xf32>
    %426 = arith.mulf %386, %425 : vector<1x352xf32>
    %427 = arith.addf %424, %426 : vector<1x352xf32>
    %428 = vector.extract_strided_slice %427 {offsets = [0, 16], sizes = [1, 256], strides = [1, 1]} : vector<1x352xf32> to vector<1x256xf32>
    %429 = vector.broadcast %157 : f32 to vector<1x352xf32>
    %430 = arith.mulf %368, %429 : vector<1x352xf32>
    %431 = vector.broadcast %158 : f32 to vector<1x352xf32>
    %432 = arith.mulf %371, %431 : vector<1x352xf32>
    %433 = arith.addf %430, %432 : vector<1x352xf32>
    %434 = vector.broadcast %159 : f32 to vector<1x352xf32>
    %435 = arith.mulf %374, %434 : vector<1x352xf32>
    %436 = arith.addf %433, %435 : vector<1x352xf32>
    %437 = vector.broadcast %160 : f32 to vector<1x352xf32>
    %438 = arith.mulf %377, %437 : vector<1x352xf32>
    %439 = arith.addf %436, %438 : vector<1x352xf32>
    %440 = vector.broadcast %161 : f32 to vector<1x352xf32>
    %441 = arith.mulf %380, %440 : vector<1x352xf32>
    %442 = arith.addf %439, %441 : vector<1x352xf32>
    %443 = vector.broadcast %162 : f32 to vector<1x352xf32>
    %444 = arith.mulf %383, %443 : vector<1x352xf32>
    %445 = arith.addf %442, %444 : vector<1x352xf32>
    %446 = vector.broadcast %163 : f32 to vector<1x352xf32>
    %447 = arith.mulf %386, %446 : vector<1x352xf32>
    %448 = arith.addf %445, %447 : vector<1x352xf32>
    %449 = vector.extract_strided_slice %448 {offsets = [0, 32], sizes = [1, 256], strides = [1, 1]} : vector<1x352xf32> to vector<1x256xf32>
    %450 = vector.broadcast %164 : f32 to vector<1x352xf32>
    %451 = arith.mulf %368, %450 : vector<1x352xf32>
    %452 = vector.broadcast %165 : f32 to vector<1x352xf32>
    %453 = arith.mulf %371, %452 : vector<1x352xf32>
    %454 = arith.addf %451, %453 : vector<1x352xf32>
    %455 = vector.broadcast %166 : f32 to vector<1x352xf32>
    %456 = arith.mulf %374, %455 : vector<1x352xf32>
    %457 = arith.addf %454, %456 : vector<1x352xf32>
    %458 = vector.broadcast %167 : f32 to vector<1x352xf32>
    %459 = arith.mulf %377, %458 : vector<1x352xf32>
    %460 = arith.addf %457, %459 : vector<1x352xf32>
    %461 = vector.broadcast %168 : f32 to vector<1x352xf32>
    %462 = arith.mulf %380, %461 : vector<1x352xf32>
    %463 = arith.addf %460, %462 : vector<1x352xf32>
    %464 = vector.broadcast %169 : f32 to vector<1x352xf32>
    %465 = arith.mulf %383, %464 : vector<1x352xf32>
    %466 = arith.addf %463, %465 : vector<1x352xf32>
    %467 = vector.broadcast %170 : f32 to vector<1x352xf32>
    %468 = arith.mulf %386, %467 : vector<1x352xf32>
    %469 = arith.addf %466, %468 : vector<1x352xf32>
    %470 = vector.extract_strided_slice %469 {offsets = [0, 48], sizes = [1, 256], strides = [1, 1]} : vector<1x352xf32> to vector<1x256xf32>
    %471 = vector.broadcast %171 : f32 to vector<1x352xf32>
    %472 = arith.mulf %368, %471 : vector<1x352xf32>
    %473 = vector.broadcast %172 : f32 to vector<1x352xf32>
    %474 = arith.mulf %371, %473 : vector<1x352xf32>
    %475 = arith.addf %472, %474 : vector<1x352xf32>
    %476 = vector.broadcast %173 : f32 to vector<1x352xf32>
    %477 = arith.mulf %374, %476 : vector<1x352xf32>
    %478 = arith.addf %475, %477 : vector<1x352xf32>
    %479 = vector.broadcast %174 : f32 to vector<1x352xf32>
    %480 = arith.mulf %377, %479 : vector<1x352xf32>
    %481 = arith.addf %478, %480 : vector<1x352xf32>
    %482 = vector.broadcast %175 : f32 to vector<1x352xf32>
    %483 = arith.mulf %380, %482 : vector<1x352xf32>
    %484 = arith.addf %481, %483 : vector<1x352xf32>
    %485 = vector.broadcast %176 : f32 to vector<1x352xf32>
    %486 = arith.mulf %383, %485 : vector<1x352xf32>
    %487 = arith.addf %484, %486 : vector<1x352xf32>
    %488 = vector.broadcast %177 : f32 to vector<1x352xf32>
    %489 = arith.mulf %386, %488 : vector<1x352xf32>
    %490 = arith.addf %487, %489 : vector<1x352xf32>
    %491 = vector.extract_strided_slice %490 {offsets = [0, 64], sizes = [1, 256], strides = [1, 1]} : vector<1x352xf32> to vector<1x256xf32>
    %492 = vector.broadcast %178 : f32 to vector<1x352xf32>
    %493 = arith.mulf %368, %492 : vector<1x352xf32>
    %494 = vector.broadcast %179 : f32 to vector<1x352xf32>
    %495 = arith.mulf %371, %494 : vector<1x352xf32>
    %496 = arith.addf %493, %495 : vector<1x352xf32>
    %497 = vector.broadcast %180 : f32 to vector<1x352xf32>
    %498 = arith.mulf %374, %497 : vector<1x352xf32>
    %499 = arith.addf %496, %498 : vector<1x352xf32>
    %500 = vector.broadcast %181 : f32 to vector<1x352xf32>
    %501 = arith.mulf %377, %500 : vector<1x352xf32>
    %502 = arith.addf %499, %501 : vector<1x352xf32>
    %503 = vector.broadcast %182 : f32 to vector<1x352xf32>
    %504 = arith.mulf %380, %503 : vector<1x352xf32>
    %505 = arith.addf %502, %504 : vector<1x352xf32>
    %506 = vector.broadcast %183 : f32 to vector<1x352xf32>
    %507 = arith.mulf %383, %506 : vector<1x352xf32>
    %508 = arith.addf %505, %507 : vector<1x352xf32>
    %509 = vector.broadcast %184 : f32 to vector<1x352xf32>
    %510 = arith.mulf %386, %509 : vector<1x352xf32>
    %511 = arith.addf %508, %510 : vector<1x352xf32>
    %512 = vector.extract_strided_slice %511 {offsets = [0, 80], sizes = [1, 256], strides = [1, 1]} : vector<1x352xf32> to vector<1x256xf32>
    %513 = vector.broadcast %185 : f32 to vector<1x352xf32>
    %514 = arith.mulf %368, %513 : vector<1x352xf32>
    %515 = vector.broadcast %186 : f32 to vector<1x352xf32>
    %516 = arith.mulf %371, %515 : vector<1x352xf32>
    %517 = arith.addf %514, %516 : vector<1x352xf32>
    %518 = vector.broadcast %187 : f32 to vector<1x352xf32>
    %519 = arith.mulf %374, %518 : vector<1x352xf32>
    %520 = arith.addf %517, %519 : vector<1x352xf32>
    %521 = vector.broadcast %188 : f32 to vector<1x352xf32>
    %522 = arith.mulf %377, %521 : vector<1x352xf32>
    %523 = arith.addf %520, %522 : vector<1x352xf32>
    %524 = vector.broadcast %189 : f32 to vector<1x352xf32>
    %525 = arith.mulf %380, %524 : vector<1x352xf32>
    %526 = arith.addf %523, %525 : vector<1x352xf32>
    %527 = vector.broadcast %190 : f32 to vector<1x352xf32>
    %528 = arith.mulf %383, %527 : vector<1x352xf32>
    %529 = arith.addf %526, %528 : vector<1x352xf32>
    %530 = vector.broadcast %191 : f32 to vector<1x352xf32>
    %531 = arith.mulf %386, %530 : vector<1x352xf32>
    %532 = arith.addf %529, %531 : vector<1x352xf32>
    %533 = vector.extract_strided_slice %532 {offsets = [0, 96], sizes = [1, 256], strides = [1, 1]} : vector<1x352xf32> to vector<1x256xf32>
    %534 = arith.addf %407, %428 : vector<1x256xf32>
    %535 = arith.addf %449, %470 : vector<1x256xf32>
    %536 = arith.addf %491, %512 : vector<1x256xf32>
    %537 = arith.addf %534, %535 : vector<1x256xf32>
    %538 = arith.addf %536, %533 : vector<1x256xf32>
    %539 = arith.addf %537, %538 : vector<1x256xf32>
    %540 = arith.addf %365, %539 : vector<1x256xf32>
    %541 = arith.negf %540 : vector<1x256xf32>
    %542 = math.exp %541 : vector<1x256xf32>
    %cst_83 = arith.constant 1.000000e+00 : f32
    %543 = vector.broadcast %cst_83 : f32 to vector<1x256xf32>
    %544 = arith.addf %543, %542 : vector<1x256xf32>
    %545 = arith.divf %543, %544 : vector<1x256xf32>
    %c0_84 = arith.constant 0 : index
    %c0_85 = arith.constant 0 : index
    %546 = vector.load %arg6[%c0_84, %c0_85] : memref<1x256xf32, #tpu.memory_space<vmem>>, vector<1x256xf32>
    tpu.vector_store %arg6[%c0_84, %c0_85], %545 {strides = array<i32>} : memref<1x256xf32, #tpu.memory_space<vmem>>, vector<1x256xf32>,
    %c0_86 = arith.constant 0 : index
    %c0_87 = arith.constant 0 : index
    %547 = vector.load %arg6[%c0_86, %c0_87] : memref<1x256xf32, #tpu.memory_space<vmem>>, vector<1x256xf32>
    %c0_88 = arith.constant 0 : index
    %c0_89 = arith.constant 0 : index
    %c0_90 = arith.constant 0 : index
    %548 = vector.load %arg2[%c0_88, %c0_89, %c0_90] : memref<1x4x256xf32, #tpu.memory_space<vmem>>, vector<1x4x256xf32>
    %549 = vector.shape_cast %548 : vector<1x4x256xf32> to vector<4x256xf32>
    %550 = vector.broadcast %547 : vector<1x256xf32> to vector<4x256xf32>
    %551 = arith.mulf %549, %550 : vector<4x256xf32>
    %c0_91 = arith.constant 0 : index
    %c0_92 = arith.constant 0 : index
    %c0_93 = arith.constant 0 : index
    %552 = vector.load %arg3[%c0_91, %c0_92, %c0_93] : memref<1x4x256xf32, #tpu.memory_space<vmem>>, vector<1x4x256xf32>
    %553 = vector.shape_cast %552 : vector<1x4x256xf32> to vector<4x256xf32>
    %554 = vector.shape_cast %551 : vector<4x256xf32> to vector<1x4x256xf32>
    tpu.vector_store %arg3[%c0_91, %c0_92, %c0_93], %554 {strides = array<i32>} : memref<1x4x256xf32, #tpu.memory_space<vmem>>, vector<1x4x256xf32>,
    return
  }
  func.func @transform_0(%arg0: i32) -> i32 {
    %c0_i32 = arith.constant 0 : i32
    %c0_i32_0 = arith.constant 0 : i32
    return %c0_i32 : i32
  }
  func.func @transform_1(%arg0: i32) -> (i32, i32, i32) {
    %c0_i32 = arith.constant 0 : i32
    %c0_i32_0 = arith.constant 0 : i32
    %c0_i32_1 = arith.constant 0 : i32
    return %arg0, %c0_i32, %c0_i32_0 : i32, i32, i32
  }
  func.func @transform_2(%arg0: i32) -> (i32, i32, i32) {
    %c0_i32 = arith.constant 0 : i32
    %c0_i32_0 = arith.constant 0 : i32
    %c0_i32_1 = arith.constant 0 : i32
    return %arg0, %c0_i32, %c0_i32_0 : i32, i32, i32
  }
}

</mosaic_0001>

<llo_original>
// kernel: tpu_custom_call.1
$region0: #{tpu_custom_call.1}
  #allocation0 [shape = 'u32[]', space=smem, size = 0x4, offset = 0x4, fixed_abs, tag = 'smem constant byte address 0x4 - core index']
  #allocation1 [shape = 'u32[144,128]{1,0:T(1,128)}', space=vmem, size = 0x12000, scoped, tag = 'internal scratch']
  #allocation2 [shape = 'f32[1,358]{1,0:T(1,128)}', space=vmem, size = 0x600, scoped, tag = 'scratch operand']
  #allocation3 [shape = 'f32[1,358]{1,0:T(1,128)}', space=vmem, size = 0x600, scoped, tag = 'scratch operand']
  #allocation4 [shape = 'f32[1,256]{1,0:T(1,128)}', space=vmem, size = 0x400, scoped, tag = 'scratch operand']
  %s0 = inlined_call_operand.hbm [shape: f32[98], index: 0, kind: input, shape index: {}]
  %s1 = inlined_call_operand.hbm [shape: f32[2,4,256], index: 1, kind: input, shape index: {}]
  %s2 = inlined_call_operand.hbm [shape: f32[2,4,256], index: 2, kind: output, shape index: {}]
  %s3 = sld [smem:[#allocation0]]
  $region49: #{tpu_custom_call.1} parent=0
    _
  %s5 = ssub.s32 1, %s3
  %s6 = scalar_select 0, %s5, %s3
  $region1: #{tpu_custom_call.1} parent=0
    #allocation5 [shape = 'u8[512]{0}', space=smem, size = 0x200, scoped, tag = 'input window, operand 0, single buffered']
    #allocation6 [shape = 's32[2]{0}', space=sflag, size = 0x8, scoped, tag = 'scoped memory for tpu_custom_call.1']
    #allocation7 [shape = 's32[2]{0}', space=sflag, size = 0x8, scoped, tag = 'scoped memory for tpu_custom_call.1']
    #allocation8 [shape = 's32[2]{0}', space=sflag, size = 0x8, scoped, tag = 'scoped memory for tpu_custom_call.1']
    #allocation9 [shape = 'u8[8192]{0}', space=vmem, size = 0x2000, scoped, tag = 'input window, operand 1']
    #allocation10 [shape = 'u8[8192]{0}', space=vmem, size = 0x2000, scoped, tag = 'output window, operand 0']
    %7 = vsyncpa [#allocation8], 0
    %8 = vsyncpa [#allocation6], 0
    %s9 = scalar_lea.sflag [#allocation6], 1
    %10 = vsyncpa %s9, 0
    %11 = vsyncpa [#allocation7], 0
    %s12 = scalar_lea.sflag [#allocation7], 1
    %13 = vsyncpa %s12, 0
    loop: start=0, step=1, limit=4
    $region2: #{tpu_custom_call.1} parent=1 // loop_pre_header
      _
    $region3: #{tpu_custom_call.1} parent=1 // loop_header
      %s15 = sphi 0, %s19
      %p16 = scmp.ge.s32.totalorder %s15, 4
      %s23 = sphi 0, %s23
      %s25 = sphi 0, %s23
      %s26 = sphi 0, %s25
      %s40 = sphi 0, %s26
      %s46 = sphi 0, %s48
      %s49 = sphi 0, %s46
      %s50 = sphi 0, %s49
      %s66 = sphi 0, %s50
      %s72 = sphi 0, %s74
      %s75 = sphi 0, %s72
      %s76 = sphi 0, %s75
      %s92 = sphi 0, %s76
    $region4: #{tpu_custom_call.1} parent=1 // loop_header_branch
      %18 = sbr.rel (%p16) target = $region8
    $region5: #{tpu_custom_call.1} parent=1 // loop_body
      %s20 = ssub.s32 %s15, 1
      %s21 = ssub.s32 %s15, 2
      %s22 = sadd.s32 %s15, 1
      %s24 = sadd.s32 %s23, 1
      %p27 = scmp.eq.s32.totalorder %s15, 1
      %p28 = scmp.ne.s32.totalorder %s23, %s25
      %p29 = scmp.eq.s32.totalorder %s15, 0
      %p30 = por %p28, %p29
      %p31 = scmp.ne.s32.totalorder %s23, %s25
      %p32 = scmp.eq.s32.totalorder %s20, 1
      %p33 = por %p31, %p32
      %p34 = scmp.ne.s32.totalorder %s25, %s26
      %p35 = scmp.eq.s32.totalorder %s20, 0
      %p36 = por %p34, %p35
      %p37 = scmp.ne.s32.totalorder %s25, %s26
      %p38 = scmp.eq.s32.totalorder %s21, 1
      %p39 = por %p37, %p38
      %p41 = scmp.ne.s32.totalorder %s26, %s40
      %p42 = scmp.eq.s32.totalorder %s21, 0
      %p43 = por %p41, %p42
      %s44 = ssub.s32 %s15, %s22
      %p45 = scmp.eq.s32.totalorder %s44, 0
      %s47 = sadd.s32 %s46, 1
      %s48 = scalar_select %p45, %s46, %s47
      %p51 = pneg %p45
      %p52 = scmp.eq.s32.totalorder %s15, 1
      %p53 = por %p51, %p52
      %p54 = scmp.ne.s32.totalorder %s46, %s49
      %p55 = scmp.eq.s32.totalorder %s15, 0
      %p56 = por %p54, %p55
      %p57 = scmp.ne.s32.totalorder %s46, %s49
      %p58 = scmp.eq.s32.totalorder %s20, 1
      %p59 = por %p57, %p58
      %p60 = scmp.ne.s32.totalorder %s49, %s50
      %p61 = scmp.eq.s32.totalorder %s20, 0
      %p62 = por %p60, %p61
      %p63 = scmp.ne.s32.totalorder %s49, %s50
      %p64 = scmp.eq.s32.totalorder %s21, 1
      %p65 = por %p63, %p64
      %p67 = scmp.ne.s32.totalorder %s50, %s66
      %p68 = scmp.eq.s32.totalorder %s21, 0
      %p69 = por %p67, %p68
      %s70 = ssub.s32 %s15, %s22
      %p71 = scmp.eq.s32.totalorder %s70, 0
      %s73 = sadd.s32 %s72, 1
      %s74 = scalar_select %p71, %s72, %s73
      %p77 = pneg %p71
      %p78 = scmp.eq.s32.totalorder %s15, 1
      %p79 = por %p77, %p78
      %p80 = scmp.ne.s32.totalorder %s72, %s75
      %p81 = scmp.eq.s32.totalorder %s15, 0
      %p82 = por %p80, %p81
      %p83 = scmp.ne.s32.totalorder %s72, %s75
      %p84 = scmp.eq.s32.totalorder %s20, 1
      %p85 = por %p83, %p84
      %p86 = scmp.ne.s32.totalorder %s75, %s76
      %p87 = scmp.eq.s32.totalorder %s20, 0
      %p88 = por %p86, %p87
      %p89 = scmp.ne.s32.totalorder %s75, %s76
      %p90 = scmp.eq.s32.totalorder %s21, 1
      %p91 = por %p89, %p90
      %p93 = scmp.ne.s32.totalorder %s76, %s92
      %p94 = scmp.eq.s32.totalorder %s21, 0
      %p95 = por %p93, %p94
      %p96 = scmp.le.s32.totalorder 1, %s15
      %p97 = scmp.lt.s32.totalorder %s15, 3
      %p98 = pnand %p96, %p97
      %p99 = pneg %p98
      // Predicated region
      $region9: #{tpu_custom_call.1} parent=5 // pred_check
        _
      $region10: #{tpu_custom_call.1} parent=5 // pred_check_branch
        %101 = sbr.rel (%p98) target = $region12
      $region11: #{tpu_custom_call.1} parent=5 // pred_region
        %s102 = ssub.s32 %s15, 1
        // Predicated region
        $region13: #{tpu_custom_call.1} parent=11 // pred_check
          %p103 = pneg %p36
        $region14: #{tpu_custom_call.1} parent=11 // pred_check_branch
          %105 = sbr.rel (%p103) target = $region16
        $region15: #{tpu_custom_call.1} parent=11 // pred_region
          %s107 = ssub.s32 16, 16
          %108 = vsyncadd [#allocation8], %s107
          %111 = dma.hbm_to_smem %s0, 16, [#allocation5], [#allocation8]
        $region16: #{tpu_custom_call.1} parent=11 // pred_fallthru
          _
      $region12: #{tpu_custom_call.1} parent=5 // pred_fallthru
        _
      %p112 = scmp.lt.s32.totalorder %s15, 2
      // Predicated region
      $region17: #{tpu_custom_call.1} parent=5 // pred_check
        %p113 = pneg %p112
      $region18: #{tpu_custom_call.1} parent=5 // pred_check_branch
        %115 = sbr.rel (%p113) target = $region20
      $region19: #{tpu_custom_call.1} parent=5 // pred_region
        // Predicated region
        $region21: #{tpu_custom_call.1} parent=19 // pred_check
          %p116 = pneg %p56
        $region22: #{tpu_custom_call.1} parent=19 // pred_check_branch
          %118 = sbr.rel (%p116) target = $region24
        $region23: #{tpu_custom_call.1} parent=19 // pred_region
          %s119 = sand.u32 %s46, 1
          %s120 = scalar_lea.sflag [#allocation6], %s119
          %s121 = sand.u32 %s46, 1
          %s122 = smul.addr %s121, 8
          %s123 = scalar_lea.vmem [#allocation9], %s122
          %s125 = ssub.s32 128, 128
          %126 = vsyncadd %s120, %s125
          %s127 = smul.addr %s15, 2
          %s128 = smul.addr %s127, 64
          %s129 = scalar_lea.hbm %s1, %s128
          %s131 = sshll.u32 %s123, 4
          %s132 = int_to_ptr.vmem [resolvable:$true] %s131
          %134 = dma.hbm_to_vmem [thread:$0]  %s129, 128, %s132, %s120
        $region24: #{tpu_custom_call.1} parent=19 // pred_fallthru
          _
      $region20: #{tpu_custom_call.1} parent=5 // pred_fallthru
        _
      %p135 = scmp.le.s32.totalorder 1, %s15
      %p136 = scmp.lt.s32.totalorder %s15, 3
      %p137 = pnand %p135, %p136
      %p138 = pneg %p137
      // Predicated region
      $region25: #{tpu_custom_call.1} parent=5 // pred_check
        _
      $region26: #{tpu_custom_call.1} parent=5 // pred_check_branch
        %140 = sbr.rel (%p137) target = $region28
      $region27: #{tpu_custom_call.1} parent=5 // pred_region
        %s141 = ssub.s32 %s15, 1
        // Predicated region
        $region29: #{tpu_custom_call.1} parent=27 // pred_check
          %p142 = pneg %p36
        $region30: #{tpu_custom_call.1} parent=27 // pred_check_branch
          %144 = sbr.rel (%p142) target = $region32
        $region31: #{tpu_custom_call.1} parent=27 // pred_region
          %145 = dma.done [#allocation8], 16
        $region32: #{tpu_custom_call.1} parent=27 // pred_fallthru
          _
        %s146 = sand.u32 %s49, 1
        %s147 = scalar_lea.sflag [#allocation6], %s146
        %s148 = sand.u32 %s49, 1
        %s149 = smul.addr %s148, 8
        %s150 = scalar_lea.vmem [#allocation9], %s149
        // Predicated region
        $region33: #{tpu_custom_call.1} parent=27 // pred_check
          %p151 = pneg %p62
        $region34: #{tpu_custom_call.1} parent=27 // pred_check_branch
          %153 = sbr.rel (%p151) target = $region36
        $region35: #{tpu_custom_call.1} parent=27 // pred_region
          %154 = dma.done %s147, 128
        $region36: #{tpu_custom_call.1} parent=27 // pred_fallthru
          _
        %155 = sfence
        %p156 = pneg %p36
        %p157 = pneg %p33
        %s158 = sand.u32 %s49, 1
        %s159 = scalar_lea.sflag [#allocation6], %s158
        %s160 = sand.u32 %s49, 1
        %s161 = smul.addr %s160, 8
        %s162 = scalar_lea.vmem [#allocation9], %s161
        %p163 = pneg %p62
        %p164 = pneg %p59
        %p165 = pneg %p88
        %p166 = pneg %p85
        %s167 = sand.u32 %s75, 1
        %s168 = scalar_lea.sflag [#allocation7], %s167
        %s169 = sand.u32 %s75, 1
        %s170 = smul.addr %s169, 8
        %s171 = scalar_lea.vmem [#allocation10], %s170
        %v172 = vlaneseq
        %vm173 = vcmp.ge.s32.totalorder %v172, 0
        %vm174 = vcmp.lt.s32.totalorder %v172, 358
        %vm175 = vmand %vm173, %vm174
        %176 = vst.msk [vmem:[#allocation2] sm:$0x7] %vm175, 0.0
        %177 = vst.msk [vmem:[#allocation3] sm:$0x7] %vm175, 0.0
        %v178 = vld [vmem:[%s150] sm:$0xff]
        %v180 = vcombine.high %v178, %v178
        %vm182 = vcmask 1043456
        %v183 = vsel %vm182, %v178, 0.0
        %v184 = vrot.slane %v183, 4
        %v185 = vadd.f32 %v183, %v184
        %v186 = vrot.slane %v185, 2
        %v187 = vadd.f32 %v185, %v186
        %v188 = vrot.slane %v187, 1
        %v189 = vadd.f32 %v187, %v188
        %v190 = vsel %vm182, %v180, 0.0
        %v191 = vrot.slane %v190, 4
        %v192 = vadd.f32 %v190, %v191
        %v193 = vrot.slane %v192, 2
        %v194 = vadd.f32 %v192, %v193
        %v195 = vrot.slane %v194, 1
        %v196 = vadd.f32 %v194, %v195
        %v197 = vsel %vm182, %v178, -inf
        %v198 = vrot.slane %v197, 4
        %v199 = vmax.f32 %v197, %v198
        %v200 = vrot.slane %v199, 2
        %v201 = vmax.f32 %v199, %v200
        %v202 = vrot.slane %v201, 1
        %v203 = vmax.f32 %v201, %v202
        %v204 = vsel %vm182, %v180, -inf
        %v205 = vrot.slane %v204, 4
        %v206 = vmax.f32 %v204, %v205
        %v207 = vrot.slane %v206, 2
        %v208 = vmax.f32 %v206, %v207
        %v209 = vrot.slane %v208, 1
        %v210 = vmax.f32 %v208, %v209
        %v211 = vmul.f32 %v189, 0.25
        %v212 = vmul.f32 %v196, 0.25
        %v215 = vcombine.low %v211, %v212
        %v217 = vunpack.c.l.s4 1966171168
        %v218 = vunpack.c.0.s8 %v217
        %v219 = vlaneseq
        %v220 = vshrl.u32 %v219, 7
        %v221 = vsub.s32 %v218, %v220
        %v222 = vrot.slane %v215, %v221
        %v224 = vunpack.c.l.s4 1966171168
        %v225 = vunpack.c.0.s8 %v224
        %v226 = vlaneseq
        %v227 = vshrl.u32 %v226, 7
        %v228 = vsub.s32 %v225, %v227
        %v229 = vrot.slane %v222, %v228
        %230 = vrot.lane.b32.xlu0 %v229, 51
        %v231 = vpop.permute.xlu0 %230
        %v232 = vrot.slane %v231, 7
        %vm233 = vcmask 416768
        %v234 = vsel %vm233, %v232, %v231
        %vm236 = vcmp.ge.s32.totalorder %v172, 51
        %vm237 = vcmp.lt.s32.totalorder %v172, 307
        %vm238 = vmand %vm236, %vm237
        %239 = vst.msk [vmem:[#allocation2] sm:$0x7] %vm238, %v234
        %v242 = vcombine.low %v203, %v210
        %v244 = vunpack.c.l.s4 1966171168
        %v245 = vunpack.c.0.s8 %v244
        %v246 = vlaneseq
        %v247 = vshrl.u32 %v246, 7
        %v248 = vsub.s32 %v245, %v247
        %v249 = vrot.slane %v242, %v248
        %v251 = vunpack.c.l.s4 1966171168
        %v252 = vunpack.c.0.s8 %v251
        %v253 = vlaneseq
        %v254 = vshrl.u32 %v253, 7
        %v255 = vsub.s32 %v252, %v254
        %v256 = vrot.slane %v249, %v255
        %257 = vrot.lane.b32.xlu0 %v256, 51
        %v258 = vpop.permute.xlu0 %257
        %v259 = vrot.slane %v258, 7
        %v260 = vsel %vm233, %v259, %v258
        %262 = vst.msk [vmem:[#allocation3] sm:$0x7] %vm238, %v260
        %v263 = vlaneseq
        %v264 = vand.u32 %v263, 127
        %v265 = vadd.s32 %v264, 128
        %v266 = vadd.s32 %v264, 256
        %vm267 = vcmp.lt.s32.totalorder %v264, 0
        %v268 = vsub.s32 0, %v264
        %v269 = vsel %vm267, %v268, %v264
        %v270 = vshrl.u32 %v269, 4
        %v271 = vand.u32 %v269, 15
        %v272 = vsub.s32 0, %v271
        %v273 = vsel %vm267, %v272, %v271
        %vm274 = vcmp.lt.s32.totalorder %v265, 0
        %v275 = vsub.s32 0, %v265
        %v276 = vsel %vm274, %v275, %v265
        %v277 = vshrl.u32 %v276, 4
        %v278 = vand.u32 %v276, 15
        %v279 = vsub.s32 0, %v278
        %v280 = vsel %vm274, %v279, %v278
        %vm281 = vcmp.lt.s32.totalorder %v266, 0
        %v282 = vsub.s32 0, %v266
        %v283 = vsel %vm281, %v282, %v266
        %v284 = vshrl.u32 %v283, 4
        %v285 = vand.u32 %v283, 15
        %v286 = vsub.s32 0, %v285
        %v287 = vsel %vm281, %v286, %v285
        %vm288 = vcmp.ne.s32.totalorder %v273, 0
        %vm289 = vcmp.ne.s32.totalorder %v280, 0
        %vm290 = vcmp.ne.s32.totalorder %v287, 0
        %vm291 = vcmp.lt.s32.totalorder %v273, 0
        %vm292 = vcmp.lt.s32.totalorder %v280, 0
        %vm293 = vcmp.lt.s32.totalorder %v287, 0
        %vm294 = vmand %vm291, %vm288
        %vm295 = vmand %vm292, %vm289
        %vm296 = vmand %vm293, %vm290
        %v297 = vadd.s32 %v273, 16
        %v298 = vadd.s32 %v280, 16
        %v299 = vadd.s32 %v287, 16
        %v300 = vsel %vm294, %v297, %v273
        %v301 = vsel %vm295, %v298, %v280
        %v302 = vsel %vm296, %v299, %v287
        %v303 = vadd.s32 %v300, 4294967293
        %v304 = vadd.s32 %v301, 4294967293
        %v305 = vadd.s32 %v302, 4294967293
        %vm306 = vcmp.ge.s32.totalorder %v303, 0
        %vm307 = vcmp.ge.s32.totalorder %v304, 0
        %vm308 = vcmp.ge.s32.totalorder %v305, 0
        %vm309 = vcmp.lt.s32.totalorder %v303, 16
        %vm310 = vcmp.lt.s32.totalorder %v304, 16
        %vm311 = vcmp.lt.s32.totalorder %v305, 16
        %vm312 = vmand %vm306, %vm309
        %vm313 = vmand %vm307, %vm310
        %vm314 = vmand %vm308, %vm311
        %v315 = vadd.s32 %v300, 4294967294
        %v316 = vadd.s32 %v301, 4294967294
        %v317 = vadd.s32 %v302, 4294967294
        %vm318 = vcmp.ge.s32.totalorder %v315, 0
        %vm319 = vcmp.ge.s32.totalorder %v316, 0
        %vm320 = vcmp.ge.s32.totalorder %v317, 0
        %vm321 = vcmp.lt.s32.totalorder %v315, 16
        %vm322 = vcmp.lt.s32.totalorder %v316, 16
        %vm323 = vcmp.lt.s32.totalorder %v317, 16
        %vm324 = vmand %vm318, %vm321
        %vm325 = vmand %vm319, %vm322
        %vm326 = vmand %vm320, %vm323
        %v327 = vadd.s32 %v300, 4294967295
        %v328 = vadd.s32 %v301, 4294967295
        %v329 = vadd.s32 %v302, 4294967295
        %vm330 = vcmp.ge.s32.totalorder %v327, 0
        %vm331 = vcmp.ge.s32.totalorder %v328, 0
        %vm332 = vcmp.ge.s32.totalorder %v329, 0
        %vm333 = vcmp.lt.s32.totalorder %v327, 16
        %vm334 = vcmp.lt.s32.totalorder %v328, 16
        %vm335 = vcmp.lt.s32.totalorder %v329, 16
        %vm336 = vmand %vm330, %vm333
        %vm337 = vmand %vm331, %vm334
        %vm338 = vmand %vm332, %vm335
        %vm339 = vcmp.ge.s32.totalorder %v300, 0
        %vm340 = vcmp.ge.s32.totalorder %v301, 0
        %vm341 = vcmp.ge.s32.totalorder %v302, 0
        %vm342 = vcmp.lt.s32.totalorder %v300, 16
        %vm343 = vcmp.lt.s32.totalorder %v301, 16
        %vm344 = vcmp.lt.s32.totalorder %v302, 16
        %vm345 = vmand %vm339, %vm342
        %vm346 = vmand %vm340, %vm343
        %vm347 = vmand %vm341, %vm344
        %v348 = vadd.s32 %v300, 1
        %v349 = vadd.s32 %v301, 1
        %v350 = vadd.s32 %v302, 1
        %vm351 = vcmp.ge.s32.totalorder %v348, 0
        %vm352 = vcmp.ge.s32.totalorder %v349, 0
        %vm353 = vcmp.ge.s32.totalorder %v350, 0
        %vm354 = vcmp.lt.s32.totalorder %v348, 16
        %vm355 = vcmp.lt.s32.totalorder %v349, 16
        %vm356 = vcmp.lt.s32.totalorder %v350, 16
        %vm357 = vmand %vm351, %vm354
        %vm358 = vmand %vm352, %vm355
        %vm359 = vmand %vm353, %vm356
        %v360 = vadd.s32 %v300, 2
        %v361 = vadd.s32 %v301, 2
        %v362 = vadd.s32 %v302, 2
        %vm363 = vcmp.ge.s32.totalorder %v360, 0
        %vm364 = vcmp.ge.s32.totalorder %v361, 0
        %vm365 = vcmp.ge.s32.totalorder %v362, 0
        %vm366 = vcmp.lt.s32.totalorder %v360, 16
        %vm367 = vcmp.lt.s32.totalorder %v361, 16
        %vm368 = vcmp.lt.s32.totalorder %v362, 16
        %vm369 = vmand %vm363, %vm366
        %vm370 = vmand %vm364, %vm367
        %vm371 = vmand %vm365, %vm368
        %v372 = vadd.s32 %v300, 3
        %v373 = vadd.s32 %v301, 3
        %v374 = vadd.s32 %v302, 3
        %vm375 = vcmp.ge.s32.totalorder %v372, 0
        %vm376 = vcmp.ge.s32.totalorder %v373, 0
        %vm377 = vcmp.ge.s32.totalorder %v374, 0
        %vm378 = vcmp.lt.s32.totalorder %v372, 16
        %vm379 = vcmp.lt.s32.totalorder %v373, 16
        %vm380 = vcmp.lt.s32.totalorder %v374, 16
        %vm381 = vmand %vm375, %vm378
        %vm382 = vmand %vm376, %vm379
        %vm383 = vmand %vm377, %vm380
        %s384 = sld [smem:[#allocation5]]
        %s385 = sld [smem:[#allocation5 + $0x1]]
        %s386 = sld [smem:[#allocation5 + $0x2]]
        %s387 = sld [smem:[#allocation5 + $0x3]]
        %s388 = sld [smem:[#allocation5 + $0x4]]
        %s389 = sld [smem:[#allocation5 + $0x5]]
        %s390 = sld [smem:[#allocation5 + $0x6]]
        %s391 = sld [smem:[#allocation5 + $0x7]]
        %s392 = sld [smem:[#allocation5 + $0x8]]
        %s393 = sld [smem:[#allocation5 + $0x9]]
        %s394 = sld [smem:[#allocation5 + $0xa]]
        %s395 = sld [smem:[#allocation5 + $0xb]]
        %s396 = sld [smem:[#allocation5 + $0xc]]
        %s397 = sld [smem:[#allocation5 + $0xd]]
        %s398 = sld [smem:[#allocation5 + $0xe]]
        %s399 = sld [smem:[#allocation5 + $0xf]]
        %s400 = sld [smem:[#allocation5 + $0x10]]
        %s401 = sld [smem:[#allocation5 + $0x11]]
        %s402 = sld [smem:[#allocation5 + $0x12]]
        %s403 = sld [smem:[#allocation5 + $0x13]]
        %s404 = sld [smem:[#allocation5 + $0x14]]
        %s405 = sld [smem:[#allocation5 + $0x15]]
        %s406 = sld [smem:[#allocation5 + $0x16]]
        %s407 = sld [smem:[#allocation5 + $0x17]]
        %s408 = sld [smem:[#allocation5 + $0x18]]
        %s409 = sld [smem:[#allocation5 + $0x19]]
        %s410 = sld [smem:[#allocation5 + $0x1a]]
        %s411 = sld [smem:[#allocation5 + $0x1b]]
        %s412 = sld [smem:[#allocation5 + $0x1c]]
        %s413 = sld [smem:[#allocation5 + $0x1d]]
        %s414 = sld [smem:[#allocation5 + $0x1e]]
        %s415 = sld [smem:[#allocation5 + $0x1f]]
        %s416 = sld [smem:[#allocation5 + $0x20]]
        %s417 = sld [smem:[#allocation5 + $0x21]]
        %s418 = sld [smem:[#allocation5 + $0x22]]
        %s419 = sld [smem:[#allocation5 + $0x23]]
        %s420 = sld [smem:[#allocation5 + $0x24]]
        %s421 = sld [smem:[#allocation5 + $0x25]]
        %s422 = sld [smem:[#allocation5 + $0x26]]
        %s423 = sld [smem:[#allocation5 + $0x27]]
        %s424 = sld [smem:[#allocation5 + $0x28]]
        %s425 = sld [smem:[#allocation5 + $0x29]]
        %s426 = sld [smem:[#allocation5 + $0x2a]]
        %s427 = sld [smem:[#allocation5 + $0x2b]]
        %s428 = sld [smem:[#allocation5 + $0x2c]]
        %s429 = sld [smem:[#allocation5 + $0x2d]]
        %s430 = sld [smem:[#allocation5 + $0x2e]]
        %s431 = sld [smem:[#allocation5 + $0x2f]]
        %s432 = sld [smem:[#allocation5 + $0x30]]
        %s433 = sld [smem:[#allocation5 + $0x31]]
        %s434 = sld [smem:[#allocation5 + $0x32]]
        %s435 = sld [smem:[#allocation5 + $0x33]]
        %s436 = sld [smem:[#allocation5 + $0x34]]
        %s437 = sld [smem:[#allocation5 + $0x35]]
        %s438 = sld [smem:[#allocation5 + $0x36]]
        %s439 = sld [smem:[#allocation5 + $0x37]]
        %s440 = sld [smem:[#allocation5 + $0x38]]
        %s441 = sld [smem:[#allocation5 + $0x39]]
        %s442 = sld [smem:[#allocation5 + $0x3a]]
        %s443 = sld [smem:[#allocation5 + $0x3b]]
        %s444 = sld [smem:[#allocation5 + $0x3c]]
        %s445 = sld [smem:[#allocation5 + $0x3d]]
        %s446 = sld [smem:[#allocation5 + $0x3e]]
        %s447 = sld [smem:[#allocation5 + $0x3f]]
        %s448 = sld [smem:[#allocation5 + $0x40]]
        %s449 = sld [smem:[#allocation5 + $0x41]]
        %s450 = sld [smem:[#allocation5 + $0x42]]
        %s451 = sld [smem:[#allocation5 + $0x43]]
        %s452 = sld [smem:[#allocation5 + $0x44]]
        %s453 = sld [smem:[#allocation5 + $0x45]]
        %s454 = sld [smem:[#allocation5 + $0x46]]
        %s455 = sld [smem:[#allocation5 + $0x47]]
        %s456 = sld [smem:[#allocation5 + $0x48]]
        %s457 = sld [smem:[#allocation5 + $0x49]]
        %s458 = sld [smem:[#allocation5 + $0x4a]]
        %s459 = sld [smem:[#allocation5 + $0x4b]]
        %s460 = sld [smem:[#allocation5 + $0x4c]]
        %s461 = sld [smem:[#allocation5 + $0x4d]]
        %s462 = sld [smem:[#allocation5 + $0x4e]]
        %s463 = sld [smem:[#allocation5 + $0x4f]]
        %s464 = sld [smem:[#allocation5 + $0x50]]
        %s465 = sld [smem:[#allocation5 + $0x51]]
        %s466 = sld [smem:[#allocation5 + $0x52]]
        %s467 = sld [smem:[#allocation5 + $0x53]]
        %s468 = sld [smem:[#allocation5 + $0x54]]
        %s469 = sld [smem:[#allocation5 + $0x55]]
        %s470 = sld [smem:[#allocation5 + $0x56]]
        %s471 = sld [smem:[#allocation5 + $0x57]]
        %s472 = sld [smem:[#allocation5 + $0x58]]
        %s473 = sld [smem:[#allocation5 + $0x59]]
        %s474 = sld [smem:[#allocation5 + $0x5a]]
        %s475 = sld [smem:[#allocation5 + $0x5b]]
        %s476 = sld [smem:[#allocation5 + $0x5c]]
        %s477 = sld [smem:[#allocation5 + $0x5d]]
        %s478 = sld [smem:[#allocation5 + $0x5e]]
        %s479 = sld [smem:[#allocation5 + $0x5f]]
        %s480 = sld [smem:[#allocation5 + $0x60]]
        %s481 = sld [smem:[#allocation5 + $0x61]]
        %v482 = vld [vmem:[#allocation2] sm:$0x7]
        %v484 = vlaneseq
        %v485 = vshrl.u32 %v484, 7
        %v486 = vsub.s32 0, %v485
        %v487 = vrot.slane %v482, %v486
        %v488 = vlaneseq
        %v489 = vshrl.u32 %v488, 7
        %v490 = vsub.s32 1, %v489
        %v491 = vrot.slane %v482, %v490
        %v492 = vlaneseq
        %v493 = vshrl.u32 %v492, 7
        %v494 = vsub.s32 2, %v493
        %v495 = vrot.slane %v482, %v494
        %v499 = vsel %vm312, %v487, 0.0
        %v500 = vsel %vm313, %v491, 0.0
        %v501 = vsel %vm314, %v495, 0.0
        %502 = vrot.lane.b32.xlu0 %v487, 127
        %v503 = vpop.permute.xlu0 %502
        %504 = vrot.lane.b32.xlu0 %v491, 127
        %v505 = vpop.permute.xlu0 %504
        %506 = vrot.lane.b32.xlu0 %v495, 127
        %v507 = vpop.permute.xlu0 %506
        %vm508 = vcmask 1039360
        %v509 = vsel %vm508, %v503, %v505
        %v510 = vsel %vm508, %v505, %v507
        %v514 = vsel %vm324, %v509, 0.0
        %v515 = vsel %vm325, %v510, 0.0
        %v516 = vsel %vm326, %v507, 0.0
        %517 = vrot.lane.b32.xlu0 %v487, 126
        %v518 = vpop.permute.xlu0 %517
        %519 = vrot.lane.b32.xlu0 %v491, 126
        %v520 = vpop.permute.xlu0 %519
        %521 = vrot.lane.b32.xlu0 %v495, 126
        %v522 = vpop.permute.xlu0 %521
        %vm523 = vcmask 1031168
        %v524 = vsel %vm523, %v518, %v520
        %v525 = vsel %vm523, %v520, %v522
        %v529 = vsel %vm336, %v524, 0.0
        %v530 = vsel %vm337, %v525, 0.0
        %v531 = vsel %vm338, %v522, 0.0
        %532 = vrot.lane.b32.xlu0 %v487, 125
        %v533 = vpop.permute.xlu0 %532
        %534 = vrot.lane.b32.xlu0 %v491, 125
        %v535 = vpop.permute.xlu0 %534
        %536 = vrot.lane.b32.xlu0 %v495, 125
        %v537 = vpop.permute.xlu0 %536
        %vm538 = vcmask 1022976
        %v539 = vsel %vm538, %v533, %v535
        %v540 = vsel %vm538, %v535, %v537
        %v544 = vsel %vm345, %v539, 0.0
        %v545 = vsel %vm346, %v540, 0.0
        %v546 = vsel %vm347, %v537, 0.0
        %547 = vrot.lane.b32.xlu0 %v487, 124
        %v548 = vpop.permute.xlu0 %547
        %549 = vrot.lane.b32.xlu0 %v491, 124
        %v550 = vpop.permute.xlu0 %549
        %551 = vrot.lane.b32.xlu0 %v495, 124
        %v552 = vpop.permute.xlu0 %551
        %vm553 = vcmask 1014784
        %v554 = vsel %vm553, %v548, %v550
        %v555 = vsel %vm553, %v550, %v552
        %v559 = vsel %vm357, %v554, 0.0
        %v560 = vsel %vm358, %v555, 0.0
        %v561 = vsel %vm359, %v552, 0.0
        %562 = vrot.lane.b32.xlu0 %v487, 123
        %v563 = vpop.permute.xlu0 %562
        %564 = vrot.lane.b32.xlu0 %v491, 123
        %v565 = vpop.permute.xlu0 %564
        %566 = vrot.lane.b32.xlu0 %v495, 123
        %v567 = vpop.permute.xlu0 %566
        %vm568 = vcmask 1006592
        %v569 = vsel %vm568, %v563, %v565
        %v570 = vsel %vm568, %v565, %v567
        %v574 = vsel %vm369, %v569, 0.0
        %v575 = vsel %vm370, %v570, 0.0
        %v576 = vsel %vm371, %v567, 0.0
        %577 = vrot.lane.b32.xlu0 %v487, 122
        %v578 = vpop.permute.xlu0 %577
        %579 = vrot.lane.b32.xlu0 %v491, 122
        %v580 = vpop.permute.xlu0 %579
        %581 = vrot.lane.b32.xlu0 %v495, 122
        %v582 = vpop.permute.xlu0 %581
        %vm583 = vcmask 998400
        %v584 = vsel %vm583, %v578, %v580
        %v585 = vsel %vm583, %v580, %v582
        %v589 = vsel %vm381, %v584, 0.0
        %v590 = vsel %vm382, %v585, 0.0
        %v591 = vsel %vm383, %v582, 0.0
        %v592 = vstv %s384
        %v593 = vmul.f32 %v499, %v592
        %v594 = vmul.f32 %v500, %v592
        %v595 = vstv %s385
        %v596 = vmul.f32 %v514, %v595
        %v597 = vmul.f32 %v515, %v595
        %v598 = vadd.f32 %v593, %v596
        %v599 = vadd.f32 %v594, %v597
        %v600 = vstv %s386
        %v601 = vmul.f32 %v529, %v600
        %v602 = vmul.f32 %v530, %v600
        %v603 = vadd.f32 %v598, %v601
        %v604 = vadd.f32 %v599, %v602
        %v605 = vstv %s387
        %v606 = vmul.f32 %v544, %v605
        %v607 = vmul.f32 %v545, %v605
        %v608 = vadd.f32 %v603, %v606
        %v609 = vadd.f32 %v604, %v607
        %v610 = vstv %s388
        %v611 = vmul.f32 %v559, %v610
        %v612 = vmul.f32 %v560, %v610
        %v613 = vadd.f32 %v608, %v611
        %v614 = vadd.f32 %v609, %v612
        %v615 = vstv %s389
        %v616 = vmul.f32 %v574, %v615
        %v617 = vmul.f32 %v575, %v615
        %v618 = vadd.f32 %v613, %v616
        %v619 = vadd.f32 %v614, %v617
        %v620 = vstv %s390
        %v621 = vmul.f32 %v589, %v620
        %v622 = vmul.f32 %v590, %v620
        %v623 = vadd.f32 %v618, %v621
        %v624 = vadd.f32 %v619, %v622
        %v625 = vstv %s391
        %v626 = vmul.f32 %v499, %v625
        %v627 = vmul.f32 %v500, %v625
        %v628 = vmul.f32 %v501, %v625
        %v629 = vstv %s392
        %v630 = vmul.f32 %v514, %v629
        %v631 = vmul.f32 %v515, %v629
        %v632 = vmul.f32 %v516, %v629
        %v633 = vadd.f32 %v626, %v630
        %v634 = vadd.f32 %v627, %v631
        %v635 = vadd.f32 %v628, %v632
        %v636 = vstv %s393
        %v637 = vmul.f32 %v529, %v636
        %v638 = vmul.f32 %v530, %v636
        %v639 = vmul.f32 %v531, %v636
        %v640 = vadd.f32 %v633, %v637
        %v641 = vadd.f32 %v634, %v638
        %v642 = vadd.f32 %v635, %v639
        %v643 = vstv %s394
        %v644 = vmul.f32 %v544, %v643
        %v645 = vmul.f32 %v545, %v643
        %v646 = vmul.f32 %v546, %v643
        %v647 = vadd.f32 %v640, %v644
        %v648 = vadd.f32 %v641, %v645
        %v649 = vadd.f32 %v642, %v646
        %v650 = vstv %s395
        %v651 = vmul.f32 %v559, %v650
        %v652 = vmul.f32 %v560, %v650
        %v653 = vmul.f32 %v561, %v650
        %v654 = vadd.f32 %v647, %v651
        %v655 = vadd.f32 %v648, %v652
        %v656 = vadd.f32 %v649, %v653
        %v657 = vstv %s396
        %v658 = vmul.f32 %v574, %v657
        %v659 = vmul.f32 %v575, %v657
        %v660 = vmul.f32 %v576, %v657
        %v661 = vadd.f32 %v654, %v658
        %v662 = vadd.f32 %v655, %v659
        %v663 = vadd.f32 %v656, %v660
        %v664 = vstv %s397
        %v665 = vmul.f32 %v589, %v664
        %v666 = vmul.f32 %v590, %v664
        %v667 = vmul.f32 %v591, %v664
        %v668 = vadd.f32 %v661, %v665
        %v669 = vadd.f32 %v662, %v666
        %v670 = vadd.f32 %v663, %v667
        %v671 = vstv %s398
        %v672 = vmul.f32 %v499, %v671
        %v673 = vmul.f32 %v500, %v671
        %v674 = vmul.f32 %v501, %v671
        %v675 = vstv %s399
        %v676 = vmul.f32 %v514, %v675
        %v677 = vmul.f32 %v515, %v675
        %v678 = vmul.f32 %v516, %v675
        %v679 = vadd.f32 %v672, %v676
        %v680 = vadd.f32 %v673, %v677
        %v681 = vadd.f32 %v674, %v678
        %v682 = vstv %s400
        %v683 = vmul.f32 %v529, %v682
        %v684 = vmul.f32 %v530, %v682
        %v685 = vmul.f32 %v531, %v682
        %v686 = vadd.f32 %v679, %v683
        %v687 = vadd.f32 %v680, %v684
        %v688 = vadd.f32 %v681, %v685
        %v689 = vstv %s401
        %v690 = vmul.f32 %v544, %v689
        %v691 = vmul.f32 %v545, %v689
        %v692 = vmul.f32 %v546, %v689
        %v693 = vadd.f32 %v686, %v690
        %v694 = vadd.f32 %v687, %v691
        %v695 = vadd.f32 %v688, %v692
        %v696 = vstv %s402
        %v697 = vmul.f32 %v559, %v696
        %v698 = vmul.f32 %v560, %v696
        %v699 = vmul.f32 %v561, %v696
        %v700 = vadd.f32 %v693, %v697
        %v701 = vadd.f32 %v694, %v698
        %v702 = vadd.f32 %v695, %v699
        %v703 = vstv %s403
        %v704 = vmul.f32 %v574, %v703
        %v705 = vmul.f32 %v575, %v703
        %v706 = vmul.f32 %v576, %v703
        %v707 = vadd.f32 %v700, %v704
        %v708 = vadd.f32 %v701, %v705
        %v709 = vadd.f32 %v702, %v706
        %v710 = vstv %s404
        %v711 = vmul.f32 %v589, %v710
        %v712 = vmul.f32 %v590, %v710
        %v713 = vmul.f32 %v591, %v710
        %v714 = vadd.f32 %v707, %v711
        %v715 = vadd.f32 %v708, %v712
        %v716 = vadd.f32 %v709, %v713
        %v717 = vstv %s405
        %v718 = vmul.f32 %v499, %v717
        %v719 = vmul.f32 %v500, %v717
        %v720 = vmul.f32 %v501, %v717
        %v721 = vstv %s406
        %v722 = vmul.f32 %v514, %v721
        %v723 = vmul.f32 %v515, %v721
        %v724 = vmul.f32 %v516, %v721
        %v725 = vadd.f32 %v718, %v722
        %v726 = vadd.f32 %v719, %v723
        %v727 = vadd.f32 %v720, %v724
        %v728 = vstv %s407
        %v729 = vmul.f32 %v529, %v728
        %v730 = vmul.f32 %v530, %v728
        %v731 = vmul.f32 %v531, %v728
        %v732 = vadd.f32 %v725, %v729
        %v733 = vadd.f32 %v726, %v730
        %v734 = vadd.f32 %v727, %v731
        %v735 = vstv %s408
        %v736 = vmul.f32 %v544, %v735
        %v737 = vmul.f32 %v545, %v735
        %v738 = vmul.f32 %v546, %v735
        %v739 = vadd.f32 %v732, %v736
        %v740 = vadd.f32 %v733, %v737
        %v741 = vadd.f32 %v734, %v738
        %v742 = vstv %s409
        %v743 = vmul.f32 %v559, %v742
        %v744 = vmul.f32 %v560, %v742
        %v745 = vmul.f32 %v561, %v742
        %v746 = vadd.f32 %v739, %v743
        %v747 = vadd.f32 %v740, %v744
        %v748 = vadd.f32 %v741, %v745
        %v749 = vstv %s410
        %v750 = vmul.f32 %v574, %v749
        %v751 = vmul.f32 %v575, %v749
        %v752 = vmul.f32 %v576, %v749
        %v753 = vadd.f32 %v746, %v750
        %v754 = vadd.f32 %v747, %v751
        %v755 = vadd.f32 %v748, %v752
        %v756 = vstv %s411
        %v757 = vmul.f32 %v589, %v756
        %v758 = vmul.f32 %v590, %v756
        %v759 = vmul.f32 %v591, %v756
        %v760 = vadd.f32 %v753, %v757
        %v761 = vadd.f32 %v754, %v758
        %v762 = vadd.f32 %v755, %v759
        %v763 = vstv %s412
        %v764 = vmul.f32 %v499, %v763
        %v765 = vmul.f32 %v500, %v763
        %v766 = vmul.f32 %v501, %v763
        %v767 = vstv %s413
        %v768 = vmul.f32 %v514, %v767
        %v769 = vmul.f32 %v515, %v767
        %v770 = vmul.f32 %v516, %v767
        %v771 = vadd.f32 %v764, %v768
        %v772 = vadd.f32 %v765, %v769
        %v773 = vadd.f32 %v766, %v770
        %v774 = vstv %s414
        %v775 = vmul.f32 %v529, %v774
        %v776 = vmul.f32 %v530, %v774
        %v777 = vmul.f32 %v531, %v774
        %v778 = vadd.f32 %v771, %v775
        %v779 = vadd.f32 %v772, %v776
        %v780 = vadd.f32 %v773, %v777
        %v781 = vstv %s415
        %v782 = vmul.f32 %v544, %v781
        %v783 = vmul.f32 %v545, %v781
        %v784 = vmul.f32 %v546, %v781
        %v785 = vadd.f32 %v778, %v782
        %v786 = vadd.f32 %v779, %v783
        %v787 = vadd.f32 %v780, %v784
        %v788 = vstv %s416
        %v789 = vmul.f32 %v559, %v788
        %v790 = vmul.f32 %v560, %v788
        %v791 = vmul.f32 %v561, %v788
        %v792 = vadd.f32 %v785, %v789
        %v793 = vadd.f32 %v786, %v790
        %v794 = vadd.f32 %v787, %v791
        %v795 = vstv %s417
        %v796 = vmul.f32 %v574, %v795
        %v797 = vmul.f32 %v575, %v795
        %v798 = vmul.f32 %v576, %v795
        %v799 = vadd.f32 %v792, %v796
        %v800 = vadd.f32 %v793, %v797
        %v801 = vadd.f32 %v794, %v798
        %v802 = vstv %s418
        %v803 = vmul.f32 %v589, %v802
        %v804 = vmul.f32 %v590, %v802
        %v805 = vmul.f32 %v591, %v802
        %v806 = vadd.f32 %v799, %v803
        %v807 = vadd.f32 %v800, %v804
        %v808 = vadd.f32 %v801, %v805
        %v809 = vstv %s419
        %v810 = vmul.f32 %v499, %v809
        %v811 = vmul.f32 %v500, %v809
        %v812 = vmul.f32 %v501, %v809
        %v813 = vstv %s420
        %v814 = vmul.f32 %v514, %v813
        %v815 = vmul.f32 %v515, %v813
        %v816 = vmul.f32 %v516, %v813
        %v817 = vadd.f32 %v810, %v814
        %v818 = vadd.f32 %v811, %v815
        %v819 = vadd.f32 %v812, %v816
        %v820 = vstv %s421
        %v821 = vmul.f32 %v529, %v820
        %v822 = vmul.f32 %v530, %v820
        %v823 = vmul.f32 %v531, %v820
        %v824 = vadd.f32 %v817, %v821
        %v825 = vadd.f32 %v818, %v822
        %v826 = vadd.f32 %v819, %v823
        %v827 = vstv %s422
        %v828 = vmul.f32 %v544, %v827
        %v829 = vmul.f32 %v545, %v827
        %v830 = vmul.f32 %v546, %v827
        %v831 = vadd.f32 %v824, %v828
        %v832 = vadd.f32 %v825, %v829
        %v833 = vadd.f32 %v826, %v830
        %v834 = vstv %s423
        %v835 = vmul.f32 %v559, %v834
        %v836 = vmul.f32 %v560, %v834
        %v837 = vmul.f32 %v561, %v834
        %v838 = vadd.f32 %v831, %v835
        %v839 = vadd.f32 %v832, %v836
        %v840 = vadd.f32 %v833, %v837
        %v841 = vstv %s424
        %v842 = vmul.f32 %v574, %v841
        %v843 = vmul.f32 %v575, %v841
        %v844 = vmul.f32 %v576, %v841
        %v845 = vadd.f32 %v838, %v842
        %v846 = vadd.f32 %v839, %v843
        %v847 = vadd.f32 %v840, %v844
        %v848 = vstv %s425
        %v849 = vmul.f32 %v589, %v848
        %v850 = vmul.f32 %v590, %v848
        %v851 = vmul.f32 %v591, %v848
        %v852 = vadd.f32 %v845, %v849
        %v853 = vadd.f32 %v846, %v850
        %v854 = vadd.f32 %v847, %v851
        %v855 = vstv %s426
        %v856 = vmul.f32 %v499, %v855
        %v857 = vmul.f32 %v500, %v855
        %v858 = vmul.f32 %v501, %v855
        %v859 = vstv %s427
        %v860 = vmul.f32 %v514, %v859
        %v861 = vmul.f32 %v515, %v859
        %v862 = vmul.f32 %v516, %v859
        %v863 = vadd.f32 %v856, %v860
        %v864 = vadd.f32 %v857, %v861
        %v865 = vadd.f32 %v858, %v862
        %v866 = vstv %s428
        %v867 = vmul.f32 %v529, %v866
        %v868 = vmul.f32 %v530, %v866
        %v869 = vmul.f32 %v531, %v866
        %v870 = vadd.f32 %v863, %v867
        %v871 = vadd.f32 %v864, %v868
        %v872 = vadd.f32 %v865, %v869
        %v873 = vstv %s429
        %v874 = vmul.f32 %v544, %v873
        %v875 = vmul.f32 %v545, %v873
        %v876 = vmul.f32 %v546, %v873
        %v877 = vadd.f32 %v870, %v874
        %v878 = vadd.f32 %v871, %v875
        %v879 = vadd.f32 %v872, %v876
        %v880 = vstv %s430
        %v881 = vmul.f32 %v559, %v880
        %v882 = vmul.f32 %v560, %v880
        %v883 = vmul.f32 %v561, %v880
        %v884 = vadd.f32 %v877, %v881
        %v885 = vadd.f32 %v878, %v882
        %v886 = vadd.f32 %v879, %v883
        %v887 = vstv %s431
        %v888 = vmul.f32 %v574, %v887
        %v889 = vmul.f32 %v575, %v887
        %v890 = vmul.f32 %v576, %v887
        %v891 = vadd.f32 %v884, %v888
        %v892 = vadd.f32 %v885, %v889
        %v893 = vadd.f32 %v886, %v890
        %v894 = vstv %s432
        %v895 = vmul.f32 %v589, %v894
        %v896 = vmul.f32 %v590, %v894
        %v897 = vmul.f32 %v591, %v894
        %v898 = vadd.f32 %v891, %v895
        %v899 = vadd.f32 %v892, %v896
        %v900 = vadd.f32 %v893, %v897
        %904 = vrot.lane.b32.xlu0 %v668, 112
        %v905 = vpop.permute.xlu0 %904
        %906 = vrot.lane.b32.xlu0 %v669, 112
        %v907 = vpop.permute.xlu0 %906
        %908 = vrot.lane.b32.xlu0 %v670, 112
        %v909 = vpop.permute.xlu0 %908
        %vm910 = vcmask 916480
        %v911 = vsel %vm910, %v905, %v907
        %v912 = vsel %vm910, %v907, %v909
        %v915 = vadd.f32 %v623, %v911
        %v916 = vadd.f32 %v624, %v912
        %920 = vrot.lane.b32.xlu0 %v760, 112
        %v921 = vpop.permute.xlu0 %920
        %922 = vrot.lane.b32.xlu0 %v761, 112
        %v923 = vpop.permute.xlu0 %922
        %924 = vrot.lane.b32.xlu0 %v762, 112
        %v925 = vpop.permute.xlu0 %924
        %v926 = vsel %vm910, %v921, %v923
        %v927 = vsel %vm910, %v923, %v925
        %v931 = vadd.f32 %v714, %v926
        %v932 = vadd.f32 %v715, %v927
        %v933 = vadd.f32 %v716, %v925
        %937 = vrot.lane.b32.xlu0 %v852, 112
        %v938 = vpop.permute.xlu0 %937
        %939 = vrot.lane.b32.xlu0 %v853, 112
        %v940 = vpop.permute.xlu0 %939
        %941 = vrot.lane.b32.xlu0 %v854, 112
        %v942 = vpop.permute.xlu0 %941
        %v943 = vsel %vm910, %v938, %v940
        %v944 = vsel %vm910, %v940, %v942
        %v948 = vadd.f32 %v806, %v943
        %v949 = vadd.f32 %v807, %v944
        %v950 = vadd.f32 %v808, %v942
        %954 = vrot.lane.b32.xlu0 %v931, 96
        %v955 = vpop.permute.xlu0 %954
        %956 = vrot.lane.b32.xlu0 %v932, 96
        %v957 = vpop.permute.xlu0 %956
        %958 = vrot.lane.b32.xlu0 %v933, 96
        %v959 = vpop.permute.xlu0 %958
        %vm960 = vcmask 785408
        %v961 = vsel %vm960, %v955, %v957
        %v962 = vsel %vm960, %v957, %v959
        %v965 = vadd.f32 %v915, %v961
        %v966 = vadd.f32 %v916, %v962
        %970 = vrot.lane.b32.xlu0 %v898, 96
        %v971 = vpop.permute.xlu0 %970
        %972 = vrot.lane.b32.xlu0 %v899, 96
        %v973 = vpop.permute.xlu0 %972
        %974 = vrot.lane.b32.xlu0 %v900, 96
        %v975 = vpop.permute.xlu0 %974
        %v976 = vsel %vm960, %v971, %v973
        %v977 = vsel %vm960, %v973, %v975
        %v981 = vadd.f32 %v948, %v976
        %v982 = vadd.f32 %v949, %v977
        %v983 = vadd.f32 %v950, %v975
        %987 = vrot.lane.b32.xlu0 %v981, 64
        %v988 = vpop.permute.xlu0 %987
        %989 = vrot.lane.b32.xlu0 %v982, 64
        %v990 = vpop.permute.xlu0 %989
        %991 = vrot.lane.b32.xlu0 %v983, 64
        %v992 = vpop.permute.xlu0 %991
        %vm993 = vcmask 523264
        %v994 = vsel %vm993, %v988, %v990
        %v995 = vsel %vm993, %v990, %v992
        %v998 = vadd.f32 %v965, %v994
        %v999 = vadd.f32 %v966, %v995
        %v1000 = vld [vmem:[#allocation3] sm:$0x7]
        %v1002 = vlaneseq
        %v1003 = vshrl.u32 %v1002, 7
        %v1004 = vsub.s32 0, %v1003
        %v1005 = vrot.slane %v1000, %v1004
        %v1006 = vlaneseq
        %v1007 = vshrl.u32 %v1006, 7
        %v1008 = vsub.s32 1, %v1007
        %v1009 = vrot.slane %v1000, %v1008
        %v1010 = vlaneseq
        %v1011 = vshrl.u32 %v1010, 7
        %v1012 = vsub.s32 2, %v1011
        %v1013 = vrot.slane %v1000, %v1012
        %v1017 = vsel %vm312, %v1005, 0.0
        %v1018 = vsel %vm313, %v1009, 0.0
        %v1019 = vsel %vm314, %v1013, 0.0
        %1020 = vrot.lane.b32.xlu0 %v1005, 127
        %v1021 = vpop.permute.xlu0 %1020
        %1022 = vrot.lane.b32.xlu0 %v1009, 127
        %v1023 = vpop.permute.xlu0 %1022
        %1024 = vrot.lane.b32.xlu0 %v1013, 127
        %v1025 = vpop.permute.xlu0 %1024
        %v1026 = vsel %vm508, %v1021, %v1023
        %v1027 = vsel %vm508, %v1023, %v1025
        %v1031 = vsel %vm324, %v1026, 0.0
        %v1032 = vsel %vm325, %v1027, 0.0
        %v1033 = vsel %vm326, %v1025, 0.0
        %1034 = vrot.lane.b32.xlu0 %v1005, 126
        %v1035 = vpop.permute.xlu0 %1034
        %1036 = vrot.lane.b32.xlu0 %v1009, 126
        %v1037 = vpop.permute.xlu0 %1036
        %1038 = vrot.lane.b32.xlu0 %v1013, 126
        %v1039 = vpop.permute.xlu0 %1038
        %v1040 = vsel %vm523, %v1035, %v1037
        %v1041 = vsel %vm523, %v1037, %v1039
        %v1045 = vsel %vm336, %v1040, 0.0
        %v1046 = vsel %vm337, %v1041, 0.0
        %v1047 = vsel %vm338, %v1039, 0.0
        %1048 = vrot.lane.b32.xlu0 %v1005, 125
        %v1049 = vpop.permute.xlu0 %1048
        %1050 = vrot.lane.b32.xlu0 %v1009, 125
        %v1051 = vpop.permute.xlu0 %1050
        %1052 = vrot.lane.b32.xlu0 %v1013, 125
        %v1053 = vpop.permute.xlu0 %1052
        %v1054 = vsel %vm538, %v1049, %v1051
        %v1055 = vsel %vm538, %v1051, %v1053
        %v1059 = vsel %vm345, %v1054, 0.0
        %v1060 = vsel %vm346, %v1055, 0.0
        %v1061 = vsel %vm347, %v1053, 0.0
        %1062 = vrot.lane.b32.xlu0 %v1005, 124
        %v1063 = vpop.permute.xlu0 %1062
        %1064 = vrot.lane.b32.xlu0 %v1009, 124
        %v1065 = vpop.permute.xlu0 %1064
        %1066 = vrot.lane.b32.xlu0 %v1013, 124
        %v1067 = vpop.permute.xlu0 %1066
        %v1068 = vsel %vm553, %v1063, %v1065
        %v1069 = vsel %vm553, %v1065, %v1067
        %v1073 = vsel %vm357, %v1068, 0.0
        %v1074 = vsel %vm358, %v1069, 0.0
        %v1075 = vsel %vm359, %v1067, 0.0
        %1076 = vrot.lane.b32.xlu0 %v1005, 123
        %v1077 = vpop.permute.xlu0 %1076
        %1078 = vrot.lane.b32.xlu0 %v1009, 123
        %v1079 = vpop.permute.xlu0 %1078
        %1080 = vrot.lane.b32.xlu0 %v1013, 123
        %v1081 = vpop.permute.xlu0 %1080
        %v1082 = vsel %vm568, %v1077, %v1079
        %v1083 = vsel %vm568, %v1079, %v1081
        %v1087 = vsel %vm369, %v1082, 0.0
        %v1088 = vsel %vm370, %v1083, 0.0
        %v1089 = vsel %vm371, %v1081, 0.0
        %1090 = vrot.lane.b32.xlu0 %v1005, 122
        %v1091 = vpop.permute.xlu0 %1090
        %1092 = vrot.lane.b32.xlu0 %v1009, 122
        %v1093 = vpop.permute.xlu0 %1092
        %1094 = vrot.lane.b32.xlu0 %v1013, 122
        %v1095 = vpop.permute.xlu0 %1094
        %v1096 = vsel %vm583, %v1091, %v1093
        %v1097 = vsel %vm583, %v1093, %v1095
        %v1101 = vsel %vm381, %v1096, 0.0
        %v1102 = vsel %vm382, %v1097, 0.0
        %v1103 = vsel %vm383, %v1095, 0.0
        %v1104 = vstv %s433
        %v1105 = vmul.f32 %v1017, %v1104
        %v1106 = vmul.f32 %v1018, %v1104
        %v1107 = vstv %s434
        %v1108 = vmul.f32 %v1031, %v1107
        %v1109 = vmul.f32 %v1032, %v1107
        %v1110 = vadd.f32 %v1105, %v1108
        %v1111 = vadd.f32 %v1106, %v1109
        %v1112 = vstv %s435
        %v1113 = vmul.f32 %v1045, %v1112
        %v1114 = vmul.f32 %v1046, %v1112
        %v1115 = vadd.f32 %v1110, %v1113
        %v1116 = vadd.f32 %v1111, %v1114
        %v1117 = vstv %s436
        %v1118 = vmul.f32 %v1059, %v1117
        %v1119 = vmul.f32 %v1060, %v1117
        %v1120 = vadd.f32 %v1115, %v1118
        %v1121 = vadd.f32 %v1116, %v1119
        %v1122 = vstv %s437
        %v1123 = vmul.f32 %v1073, %v1122
        %v1124 = vmul.f32 %v1074, %v1122
        %v1125 = vadd.f32 %v1120, %v1123
        %v1126 = vadd.f32 %v1121, %v1124
        %v1127 = vstv %s438
        %v1128 = vmul.f32 %v1087, %v1127
        %v1129 = vmul.f32 %v1088, %v1127
        %v1130 = vadd.f32 %v1125, %v1128
        %v1131 = vadd.f32 %v1126, %v1129
        %v1132 = vstv %s439
        %v1133 = vmul.f32 %v1101, %v1132
        %v1134 = vmul.f32 %v1102, %v1132
        %v1135 = vadd.f32 %v1130, %v1133
        %v1136 = vadd.f32 %v1131, %v1134
        %v1137 = vstv %s440
        %v1138 = vmul.f32 %v1017, %v1137
        %v1139 = vmul.f32 %v1018, %v1137
        %v1140 = vmul.f32 %v1019, %v1137
        %v1141 = vstv %s441
        %v1142 = vmul.f32 %v1031, %v1141
        %v1143 = vmul.f32 %v1032, %v1141
        %v1144 = vmul.f32 %v1033, %v1141
        %v1145 = vadd.f32 %v1138, %v1142
        %v1146 = vadd.f32 %v1139, %v1143
        %v1147 = vadd.f32 %v1140, %v1144
        %v1148 = vstv %s442
        %v1149 = vmul.f32 %v1045, %v1148
        %v1150 = vmul.f32 %v1046, %v1148
        %v1151 = vmul.f32 %v1047, %v1148
        %v1152 = vadd.f32 %v1145, %v1149
        %v1153 = vadd.f32 %v1146, %v1150
        %v1154 = vadd.f32 %v1147, %v1151
        %v1155 = vstv %s443
        %v1156 = vmul.f32 %v1059, %v1155
        %v1157 = vmul.f32 %v1060, %v1155
        %v1158 = vmul.f32 %v1061, %v1155
        %v1159 = vadd.f32 %v1152, %v1156
        %v1160 = vadd.f32 %v1153, %v1157
        %v1161 = vadd.f32 %v1154, %v1158
        %v1162 = vstv %s444
        %v1163 = vmul.f32 %v1073, %v1162
        %v1164 = vmul.f32 %v1074, %v1162
        %v1165 = vmul.f32 %v1075, %v1162
        %v1166 = vadd.f32 %v1159, %v1163
        %v1167 = vadd.f32 %v1160, %v1164
        %v1168 = vadd.f32 %v1161, %v1165
        %v1169 = vstv %s445
        %v1170 = vmul.f32 %v1087, %v1169
        %v1171 = vmul.f32 %v1088, %v1169
        %v1172 = vmul.f32 %v1089, %v1169
        %v1173 = vadd.f32 %v1166, %v1170
        %v1174 = vadd.f32 %v1167, %v1171
        %v1175 = vadd.f32 %v1168, %v1172
        %v1176 = vstv %s446
        %v1177 = vmul.f32 %v1101, %v1176
        %v1178 = vmul.f32 %v1102, %v1176
        %v1179 = vmul.f32 %v1103, %v1176
        %v1180 = vadd.f32 %v1173, %v1177
        %v1181 = vadd.f32 %v1174, %v1178
        %v1182 = vadd.f32 %v1175, %v1179
        %v1183 = vstv %s447
        %v1184 = vmul.f32 %v1017, %v1183
        %v1185 = vmul.f32 %v1018, %v1183
        %v1186 = vmul.f32 %v1019, %v1183
        %v1187 = vstv %s448
        %v1188 = vmul.f32 %v1031, %v1187
        %v1189 = vmul.f32 %v1032, %v1187
        %v1190 = vmul.f32 %v1033, %v1187
        %v1191 = vadd.f32 %v1184, %v1188
        %v1192 = vadd.f32 %v1185, %v1189
        %v1193 = vadd.f32 %v1186, %v1190
        %v1194 = vstv %s449
        %v1195 = vmul.f32 %v1045, %v1194
        %v1196 = vmul.f32 %v1046, %v1194
        %v1197 = vmul.f32 %v1047, %v1194
        %v1198 = vadd.f32 %v1191, %v1195
        %v1199 = vadd.f32 %v1192, %v1196
        %v1200 = vadd.f32 %v1193, %v1197
        %v1201 = vstv %s450
        %v1202 = vmul.f32 %v1059, %v1201
        %v1203 = vmul.f32 %v1060, %v1201
        %v1204 = vmul.f32 %v1061, %v1201
        %v1205 = vadd.f32 %v1198, %v1202
        %v1206 = vadd.f32 %v1199, %v1203
        %v1207 = vadd.f32 %v1200, %v1204
        %v1208 = vstv %s451
        %v1209 = vmul.f32 %v1073, %v1208
        %v1210 = vmul.f32 %v1074, %v1208
        %v1211 = vmul.f32 %v1075, %v1208
        %v1212 = vadd.f32 %v1205, %v1209
        %v1213 = vadd.f32 %v1206, %v1210
        %v1214 = vadd.f32 %v1207, %v1211
        %v1215 = vstv %s452
        %v1216 = vmul.f32 %v1087, %v1215
        %v1217 = vmul.f32 %v1088, %v1215
        %v1218 = vmul.f32 %v1089, %v1215
        %v1219 = vadd.f32 %v1212, %v1216
        %v1220 = vadd.f32 %v1213, %v1217
        %v1221 = vadd.f32 %v1214, %v1218
        %v1222 = vstv %s453
        %v1223 = vmul.f32 %v1101, %v1222
        %v1224 = vmul.f32 %v1102, %v1222
        %v1225 = vmul.f32 %v1103, %v1222
        %v1226 = vadd.f32 %v1219, %v1223
        %v1227 = vadd.f32 %v1220, %v1224
        %v1228 = vadd.f32 %v1221, %v1225
        %v1229 = vstv %s454
        %v1230 = vmul.f32 %v1017, %v1229
        %v1231 = vmul.f32 %v1018, %v1229
        %v1232 = vmul.f32 %v1019, %v1229
        %v1233 = vstv %s455
        %v1234 = vmul.f32 %v1031, %v1233
        %v1235 = vmul.f32 %v1032, %v1233
        %v1236 = vmul.f32 %v1033, %v1233
        %v1237 = vadd.f32 %v1230, %v1234
        %v1238 = vadd.f32 %v1231, %v1235
        %v1239 = vadd.f32 %v1232, %v1236
        %v1240 = vstv %s456
        %v1241 = vmul.f32 %v1045, %v1240
        %v1242 = vmul.f32 %v1046, %v1240
        %v1243 = vmul.f32 %v1047, %v1240
        %v1244 = vadd.f32 %v1237, %v1241
        %v1245 = vadd.f32 %v1238, %v1242
        %v1246 = vadd.f32 %v1239, %v1243
        %v1247 = vstv %s457
        %v1248 = vmul.f32 %v1059, %v1247
        %v1249 = vmul.f32 %v1060, %v1247
        %v1250 = vmul.f32 %v1061, %v1247
        %v1251 = vadd.f32 %v1244, %v1248
        %v1252 = vadd.f32 %v1245, %v1249
        %v1253 = vadd.f32 %v1246, %v1250
        %v1254 = vstv %s458
        %v1255 = vmul.f32 %v1073, %v1254
        %v1256 = vmul.f32 %v1074, %v1254
        %v1257 = vmul.f32 %v1075, %v1254
        %v1258 = vadd.f32 %v1251, %v1255
        %v1259 = vadd.f32 %v1252, %v1256
        %v1260 = vadd.f32 %v1253, %v1257
        %v1261 = vstv %s459
        %v1262 = vmul.f32 %v1087, %v1261
        %v1263 = vmul.f32 %v1088, %v1261
        %v1264 = vmul.f32 %v1089, %v1261
        %v1265 = vadd.f32 %v1258, %v1262
        %v1266 = vadd.f32 %v1259, %v1263
        %v1267 = vadd.f32 %v1260, %v1264
        %v1268 = vstv %s460
        %v1269 = vmul.f32 %v1101, %v1268
        %v1270 = vmul.f32 %v1102, %v1268
        %v1271 = vmul.f32 %v1103, %v1268
        %v1272 = vadd.f32 %v1265, %v1269
        %v1273 = vadd.f32 %v1266, %v1270
        %v1274 = vadd.f32 %v1267, %v1271
        %v1275 = vstv %s461
        %v1276 = vmul.f32 %v1017, %v1275
        %v1277 = vmul.f32 %v1018, %v1275
        %v1278 = vmul.f32 %v1019, %v1275
        %v1279 = vstv %s462
        %v1280 = vmul.f32 %v1031, %v1279
        %v1281 = vmul.f32 %v1032, %v1279
        %v1282 = vmul.f32 %v1033, %v1279
        %v1283 = vadd.f32 %v1276, %v1280
        %v1284 = vadd.f32 %v1277, %v1281
        %v1285 = vadd.f32 %v1278, %v1282
        %v1286 = vstv %s463
        %v1287 = vmul.f32 %v1045, %v1286
        %v1288 = vmul.f32 %v1046, %v1286
        %v1289 = vmul.f32 %v1047, %v1286
        %v1290 = vadd.f32 %v1283, %v1287
        %v1291 = vadd.f32 %v1284, %v1288
        %v1292 = vadd.f32 %v1285, %v1289
        %v1293 = vstv %s464
        %v1294 = vmul.f32 %v1059, %v1293
        %v1295 = vmul.f32 %v1060, %v1293
        %v1296 = vmul.f32 %v1061, %v1293
        %v1297 = vadd.f32 %v1290, %v1294
        %v1298 = vadd.f32 %v1291, %v1295
        %v1299 = vadd.f32 %v1292, %v1296
        %v1300 = vstv %s465
        %v1301 = vmul.f32 %v1073, %v1300
        %v1302 = vmul.f32 %v1074, %v1300
        %v1303 = vmul.f32 %v1075, %v1300
        %v1304 = vadd.f32 %v1297, %v1301
        %v1305 = vadd.f32 %v1298, %v1302
        %v1306 = vadd.f32 %v1299, %v1303
        %v1307 = vstv %s466
        %v1308 = vmul.f32 %v1087, %v1307
        %v1309 = vmul.f32 %v1088, %v1307
        %v1310 = vmul.f32 %v1089, %v1307
        %v1311 = vadd.f32 %v1304, %v1308
        %v1312 = vadd.f32 %v1305, %v1309
        %v1313 = vadd.f32 %v1306, %v1310
        %v1314 = vstv %s467
        %v1315 = vmul.f32 %v1101, %v1314
        %v1316 = vmul.f32 %v1102, %v1314
        %v1317 = vmul.f32 %v1103, %v1314
        %v1318 = vadd.f32 %v1311, %v1315
        %v1319 = vadd.f32 %v1312, %v1316
        %v1320 = vadd.f32 %v1313, %v1317
        %v1321 = vstv %s468
        %v1322 = vmul.f32 %v1017, %v1321
        %v1323 = vmul.f32 %v1018, %v1321
        %v1324 = vmul.f32 %v1019, %v1321
        %v1325 = vstv %s469
        %v1326 = vmul.f32 %v1031, %v1325
        %v1327 = vmul.f32 %v1032, %v1325
        %v1328 = vmul.f32 %v1033, %v1325
        %v1329 = vadd.f32 %v1322, %v1326
        %v1330 = vadd.f32 %v1323, %v1327
        %v1331 = vadd.f32 %v1324, %v1328
        %v1332 = vstv %s470
        %v1333 = vmul.f32 %v1045, %v1332
        %v1334 = vmul.f32 %v1046, %v1332
        %v1335 = vmul.f32 %v1047, %v1332
        %v1336 = vadd.f32 %v1329, %v1333
        %v1337 = vadd.f32 %v1330, %v1334
        %v1338 = vadd.f32 %v1331, %v1335
        %v1339 = vstv %s471
        %v1340 = vmul.f32 %v1059, %v1339
        %v1341 = vmul.f32 %v1060, %v1339
        %v1342 = vmul.f32 %v1061, %v1339
        %v1343 = vadd.f32 %v1336, %v1340
        %v1344 = vadd.f32 %v1337, %v1341
        %v1345 = vadd.f32 %v1338, %v1342
        %v1346 = vstv %s472
        %v1347 = vmul.f32 %v1073, %v1346
        %v1348 = vmul.f32 %v1074, %v1346
        %v1349 = vmul.f32 %v1075, %v1346
        %v1350 = vadd.f32 %v1343, %v1347
        %v1351 = vadd.f32 %v1344, %v1348
        %v1352 = vadd.f32 %v1345, %v1349
        %v1353 = vstv %s473
        %v1354 = vmul.f32 %v1087, %v1353
        %v1355 = vmul.f32 %v1088, %v1353
        %v1356 = vmul.f32 %v1089, %v1353
        %v1357 = vadd.f32 %v1350, %v1354
        %v1358 = vadd.f32 %v1351, %v1355
        %v1359 = vadd.f32 %v1352, %v1356
        %v1360 = vstv %s474
        %v1361 = vmul.f32 %v1101, %v1360
        %v1362 = vmul.f32 %v1102, %v1360
        %v1363 = vmul.f32 %v1103, %v1360
        %v1364 = vadd.f32 %v1357, %v1361
        %v1365 = vadd.f32 %v1358, %v1362
        %v1366 = vadd.f32 %v1359, %v1363
        %v1367 = vstv %s475
        %v1368 = vmul.f32 %v1017, %v1367
        %v1369 = vmul.f32 %v1018, %v1367
        %v1370 = vmul.f32 %v1019, %v1367
        %v1371 = vstv %s476
        %v1372 = vmul.f32 %v1031, %v1371
        %v1373 = vmul.f32 %v1032, %v1371
        %v1374 = vmul.f32 %v1033, %v1371
        %v1375 = vadd.f32 %v1368, %v1372
        %v1376 = vadd.f32 %v1369, %v1373
        %v1377 = vadd.f32 %v1370, %v1374
        %v1378 = vstv %s477
        %v1379 = vmul.f32 %v1045, %v1378
        %v1380 = vmul.f32 %v1046, %v1378
        %v1381 = vmul.f32 %v1047, %v1378
        %v1382 = vadd.f32 %v1375, %v1379
        %v1383 = vadd.f32 %v1376, %v1380
        %v1384 = vadd.f32 %v1377, %v1381
        %v1385 = vstv %s478
        %v1386 = vmul.f32 %v1059, %v1385
        %v1387 = vmul.f32 %v1060, %v1385
        %v1388 = vmul.f32 %v1061, %v1385
        %v1389 = vadd.f32 %v1382, %v1386
        %v1390 = vadd.f32 %v1383, %v1387
        %v1391 = vadd.f32 %v1384, %v1388
        %v1392 = vstv %s479
        %v1393 = vmul.f32 %v1073, %v1392
        %v1394 = vmul.f32 %v1074, %v1392
        %v1395 = vmul.f32 %v1075, %v1392
        %v1396 = vadd.f32 %v1389, %v1393
        %v1397 = vadd.f32 %v1390, %v1394
        %v1398 = vadd.f32 %v1391, %v1395
        %v1399 = vstv %s480
        %v1400 = vmul.f32 %v1087, %v1399
        %v1401 = vmul.f32 %v1088, %v1399
        %v1402 = vmul.f32 %v1089, %v1399
        %v1403 = vadd.f32 %v1396, %v1400
        %v1404 = vadd.f32 %v1397, %v1401
        %v1405 = vadd.f32 %v1398, %v1402
        %v1406 = vstv %s481
        %v1407 = vmul.f32 %v1101, %v1406
        %v1408 = vmul.f32 %v1102, %v1406
        %v1409 = vmul.f32 %v1103, %v1406
        %v1410 = vadd.f32 %v1403, %v1407
        %v1411 = vadd.f32 %v1404, %v1408
        %v1412 = vadd.f32 %v1405, %v1409
        %1416 = vrot.lane.b32.xlu0 %v1180, 112
        %v1417 = vpop.permute.xlu0 %1416
        %1418 = vrot.lane.b32.xlu0 %v1181, 112
        %v1419 = vpop.permute.xlu0 %1418
        %1420 = vrot.lane.b32.xlu0 %v1182, 112
        %v1421 = vpop.permute.xlu0 %1420
        %v1422 = vsel %vm910, %v1417, %v1419
        %v1423 = vsel %vm910, %v1419, %v1421
        %v1426 = vadd.f32 %v1135, %v1422
        %v1427 = vadd.f32 %v1136, %v1423
        %1431 = vrot.lane.b32.xlu0 %v1272, 112
        %v1432 = vpop.permute.xlu0 %1431
        %1433 = vrot.lane.b32.xlu0 %v1273, 112
        %v1434 = vpop.permute.xlu0 %1433
        %1435 = vrot.lane.b32.xlu0 %v1274, 112
        %v1436 = vpop.permute.xlu0 %1435
        %v1437 = vsel %vm910, %v1432, %v1434
        %v1438 = vsel %vm910, %v1434, %v1436
        %v1442 = vadd.f32 %v1226, %v1437
        %v1443 = vadd.f32 %v1227, %v1438
        %v1444 = vadd.f32 %v1228, %v1436
        %1448 = vrot.lane.b32.xlu0 %v1364, 112
        %v1449 = vpop.permute.xlu0 %1448
        %1450 = vrot.lane.b32.xlu0 %v1365, 112
        %v1451 = vpop.permute.xlu0 %1450
        %1452 = vrot.lane.b32.xlu0 %v1366, 112
        %v1453 = vpop.permute.xlu0 %1452
        %v1454 = vsel %vm910, %v1449, %v1451
        %v1455 = vsel %vm910, %v1451, %v1453
        %v1459 = vadd.f32 %v1318, %v1454
        %v1460 = vadd.f32 %v1319, %v1455
        %v1461 = vadd.f32 %v1320, %v1453
        %1465 = vrot.lane.b32.xlu0 %v1442, 96
        %v1466 = vpop.permute.xlu0 %1465
        %1467 = vrot.lane.b32.xlu0 %v1443, 96
        %v1468 = vpop.permute.xlu0 %1467
        %1469 = vrot.lane.b32.xlu0 %v1444, 96
        %v1470 = vpop.permute.xlu0 %1469
        %v1471 = vsel %vm960, %v1466, %v1468
        %v1472 = vsel %vm960, %v1468, %v1470
        %v1475 = vadd.f32 %v1426, %v1471
        %v1476 = vadd.f32 %v1427, %v1472
        %1480 = vrot.lane.b32.xlu0 %v1410, 96
        %v1481 = vpop.permute.xlu0 %1480
        %1482 = vrot.lane.b32.xlu0 %v1411, 96
        %v1483 = vpop.permute.xlu0 %1482
        %1484 = vrot.lane.b32.xlu0 %v1412, 96
        %v1485 = vpop.permute.xlu0 %1484
        %v1486 = vsel %vm960, %v1481, %v1483
        %v1487 = vsel %vm960, %v1483, %v1485
        %v1491 = vadd.f32 %v1459, %v1486
        %v1492 = vadd.f32 %v1460, %v1487
        %v1493 = vadd.f32 %v1461, %v1485
        %1497 = vrot.lane.b32.xlu0 %v1491, 64
        %v1498 = vpop.permute.xlu0 %1497
        %1499 = vrot.lane.b32.xlu0 %v1492, 64
        %v1500 = vpop.permute.xlu0 %1499
        %1501 = vrot.lane.b32.xlu0 %v1493, 64
        %v1502 = vpop.permute.xlu0 %1501
        %v1503 = vsel %vm993, %v1498, %v1500
        %v1504 = vsel %vm993, %v1500, %v1502
        %v1507 = vadd.f32 %v1475, %v1503
        %v1508 = vadd.f32 %v1476, %v1504
        %v1509 = vadd.f32 %v998, %v1507
        %v1510 = vadd.f32 %v999, %v1508
        %v1511 = vxor.u32 %v1509, 2147483648
        %v1512 = vxor.u32 %v1510, 2147483648
        %v1513 = vmul.f32 %v1511, 1.442695
        %v1514 = vpow.pop %v1513
        %v1515 = vmul.f32 %v1512, 1.442695
        %v1516 = vpow.pop %v1515
        %v1517 = vadd.f32 %v1514, 1.0
        %v1518 = vadd.f32 %v1516, 1.0
        %v1519 = vrcp.pop %v1517
        %v1520 = vmul.f32 1.0, %v1519
        %v1521 = vrcp.pop %v1518
        %v1522 = vmul.f32 1.0, %v1521
        %v1525 = vcombine.low %v1520, %v1522
        %v1527 = vunpack.c.l.s4 1966171168
        %v1528 = vunpack.c.0.s8 %v1527
        %v1529 = vlaneseq
        %v1530 = vshrl.u32 %v1529, 7
        %v1531 = vsub.s32 %v1528, %v1530
        %v1532 = vrot.slane %v1525, %v1531
        %v1534 = vunpack.c.l.s4 1966171168
        %v1535 = vunpack.c.0.s8 %v1534
        %v1536 = vlaneseq
        %v1537 = vshrl.u32 %v1536, 7
        %v1538 = vsub.s32 %v1535, %v1537
        %v1539 = vrot.slane %v1532, %v1538
        %vm1541 = vcmp.lt.s32.totalorder %v172, 256
        %vm1542 = vmand %vm173, %vm1541
        %1543 = vst.msk [vmem:[#allocation4] sm:$0x3] %vm1542, %v1539
        %v1544 = vld [vmem:[#allocation4] sm:$0x3]
        %v1545 = vld [vmem:[%s150] sm:$0xff]
        %v1547 = vlaneseq
        %v1548 = vshrl.u32 %v1547, 7
        %v1549 = vsub.s32 0, %v1548
        %v1550 = vrot.slane %v1544, %v1549
        %v1551 = vlaneseq
        %v1552 = vshrl.u32 %v1551, 7
        %v1553 = vsub.s32 1, %v1552
        %v1554 = vrot.slane %v1544, %v1553
        %v1555 = vcombine.low %v1550, %v1554
        %v1557 = vmul.f32 %v1545, %v1555
        %1558 = vst [vmem:[%s171] sm:$0xff] %v1557
        %s1559 = sand.u32 %s75, 1
        %s1560 = scalar_lea.sflag [#allocation7], %s1559
        %s1561 = sand.u32 %s75, 1
        %s1562 = smul.addr %s1561, 8
        %s1563 = scalar_lea.vmem [#allocation10], %s1562
        // Predicated region
        $region37: #{tpu_custom_call.1} parent=27 // pred_check
          %p1564 = pneg %p85
        $region38: #{tpu_custom_call.1} parent=27 // pred_check_branch
          %1566 = sbr.rel (%p1564) target = $region40
        $region39: #{tpu_custom_call.1} parent=27 // pred_region
          %s1568 = ssub.s32 128, 128
          %1569 = vsyncadd %s1560, %s1568
          %s1570 = smul.addr %s20, 2
          %s1571 = smul.addr %s1570, 64
          %s1572 = scalar_lea.hbm %s2, %s1571
          %s1574 = sshll.u32 %s1563, 4
          %s1575 = int_to_ptr.vmem [resolvable:$true] %s1574
          %1577 = dma.vmem_to_hbm [thread:$0]  %s1575, 128, %s1572, %s1560
        $region40: #{tpu_custom_call.1} parent=27 // pred_fallthru
          _
      $region28: #{tpu_custom_call.1} parent=5 // pred_fallthru
        _
      %p1578 = scmp.le.s32.totalorder 2, %s15
      // Predicated region
      $region41: #{tpu_custom_call.1} parent=5 // pred_check
        %p1579 = pneg %p1578
      $region42: #{tpu_custom_call.1} parent=5 // pred_check_branch
        %1581 = sbr.rel (%p1579) target = $region44
      $region43: #{tpu_custom_call.1} parent=5 // pred_region
        %s1582 = ssub.s32 %s15, 2
        // Predicated region
        $region45: #{tpu_custom_call.1} parent=43 // pred_check
          %p1583 = pneg %p91
        $region46: #{tpu_custom_call.1} parent=43 // pred_check_branch
          %1585 = sbr.rel (%p1583) target = $region48
        $region47: #{tpu_custom_call.1} parent=43 // pred_region
          %s1586 = sand.u32 %s76, 1
          %s1587 = scalar_lea.sflag [#allocation7], %s1586
          %s1588 = sand.u32 %s76, 1
          %s1589 = smul.addr %s1588, 8
          %s1590 = scalar_lea.vmem [#allocation10], %s1589
          %1591 = dma.done %s1587, 128
        $region48: #{tpu_custom_call.1} parent=43 // pred_fallthru
          _
      $region44: #{tpu_custom_call.1} parent=5 // pred_fallthru
        _
    $region6: #{tpu_custom_call.1} parent=1 // loop_footer
      %s19 = sadd.s32 1, %s15
    $region7: #{tpu_custom_call.1} parent=1 // loop_footer_branch
      %14 = sbr.rel target = $region3
    $region8: #{tpu_custom_call.1} parent=1 // loop_exit
      _
    %1592 = vsyncpa [#allocation6], 1
    %s1593 = scalar_lea.sflag [#allocation6], 1
    %1594 = vsyncpa %s1593, 1
    %1595 = vsyncpa [#allocation7], 1
    %s1596 = scalar_lea.sflag [#allocation7], 1
    %1597 = vsyncpa %s1596, 1
    %1598 = vsyncpa [#allocation8], 1
    %s1599 = scalar_lea.sflag [#allocation8], 1
    %1600 = vsyncpa %s1599, 1

</llo_original>
